<compile_context>
chip_gen: v5e
topology: v5e:2x2
jax: 0.10.0
libtpu: 0.0.40
codegen_flags: <defaults>
</compile_context>

<pallas_src>
import functools

import jax
import jax.numpy as jnp
from jax.experimental import pallas as pl
from jax.experimental.pallas import tpu as pltpu

H = 32  # hidden width of the synthetic wrapped model


def _gradient_kernel(tx_ref, w1t_ref, b1t_ref, w2blk_ref, b2t_ref,
                     w3blk_ref, b3p_ref, out_ref, stk1_ref, stk2_ref):
    h = b1t_ref.shape[0]

    tx = tx_ref[...]            # (2, tm)   batch on lanes
    w1t = w1t_ref[...]          # (H, 2)
    b1t = b1t_ref[...]          # (H, 1)

    # ---- Layer 1: affine on [t, x] ------------------------------------
    # z1 = W1^T [t; x] + b1 via one tiny K=2 matmul (no sublane slicing of tx,
    # no 2-way broadcasts of t/x).
    z1 = jnp.dot(w1t, tx, preferred_element_type=jnp.float32) + b1t  # (H, tm)
    a = jnp.tanh(z1)
    s = 1.0 - a * a                      # tanh'
    neg_two_as = -2.0 * a * s            # tanh'' factor

    w1_t = w1t[:, 0:1]                   # (H, 1)  == d z1 / d t (constant)
    w1_x = w1t[:, 1:2]                   # (H, 1)  == d z1 / d x

    # Sublane-stacked operand for the block-diagonal layer-2 matmul.
    # Each stream is written into scratch as soon as it is produced
    # (aligned sublane offsets k*H, H = 32 is a multiple of 8).
    stk1_ref[0 * h:1 * h, :] = a
    stk1_ref[1 * h:2 * h, :] = s * w1_t
    stk1_ref[2 * h:3 * h, :] = s * w1_x
    stk1_ref[3 * h:4 * h, :] = neg_two_as * (w1_t * w1_t)   # ddz1 == 0
    stk1_ref[4 * h:5 * h, :] = neg_two_as * (w1_x * w1_x)

    # ---- Layer 2: ONE block-diagonal (5H,5H) @ (5H,tm) matmul ----------
    z2_all = jnp.dot(w2blk_ref[...], stk1_ref[...],
                     preferred_element_type=jnp.float32)    # (5H, tm)

    z2 = z2_all[0 * h:1 * h, :] + b2t_ref[...]   # bias only on value stream
    dz2_t = z2_all[1 * h:2 * h, :]
    dz2_x = z2_all[2 * h:3 * h, :]
    ddz2_t = z2_all[3 * h:4 * h, :]
    ddz2_x = z2_all[4 * h:5 * h, :]

    a2 = jnp.tanh(z2)
    s2 = 1.0 - a2 * a2
    neg_two_a2s2 = -2.0 * a2 * s2

    stk2_ref[0 * h:1 * h, :] = a2
    stk2_ref[1 * h:2 * h, :] = s2 * dz2_t
    stk2_ref[2 * h:3 * h, :] = s2 * dz2_x
    stk2_ref[3 * h:4 * h, :] = s2 * ddz2_t + neg_two_a2s2 * dz2_t * dz2_t
    stk2_ref[4 * h:5 * h, :] = s2 * ddz2_x + neg_two_a2s2 * dz2_x * dz2_x

    # ---- Output: block-diag projection lands directly as (8, tm) ------
    # rows: u, du_dt, du_dx, d2u_dt2, d2u_dx2, 0, 0, 0
    res = jnp.dot(w3blk_ref[...], stk2_ref[...],
                  preferred_element_type=jnp.float32)       # (8, tm)
    out_ref[...] = res + b3p_ref[...]   # one unmasked full-tile store


@functools.partial(jax.jit, static_argnames=("tm",))
def gradient_layer(t, x, params, *, tm=512):
    """Pallas GradientLayer forward: returns (u, du_dt, du_dx, d2u_dt2, d2u_dx2)."""
    w1, b1, w2, b2, w3, b3 = params
    h = w1.shape[1]
    n = t.shape[0]
    n_pad = ((n + tm - 1) // tm) * tm

    # Batch-on-lanes inputs, merged into a single (2, n_pad) stream.
    tx = jnp.stack([t.reshape(n).astype(jnp.float32),
                    x.reshape(n).astype(jnp.float32)], axis=0)
    if n_pad != n:
        tx = jnp.pad(tx, ((0, 0), (0, n_pad - n)))

    # Weight preprocessing (tiny, done once in XLA outside the kernel).
    w1t = w1.T.astype(jnp.float32)                    # (H, 2)
    b1t = b1.reshape(h, 1).astype(jnp.float32)        # (H, 1)
    w2t = w2.T.astype(jnp.float32)                    # (H, H)
    b2t = b2.reshape(h, 1).astype(jnp.float32)        # (H, 1)
    w3t = w3.T.astype(jnp.float32)                    # (1, H)

    eye5 = jnp.eye(5, dtype=jnp.float32)
    w2blk = jnp.kron(eye5, w2t)                       # (5H, 5H) block-diagonal
    w3blk = jnp.concatenate(
        [jnp.kron(eye5, w3t),                         # (5, 5H)
         jnp.zeros((3, 5 * h), jnp.float32)], axis=0)  # -> (8, 5H)
    b3p = jnp.zeros((8, 1), jnp.float32).at[0, 0].set(
        b3.reshape(-1)[0].astype(jnp.float32))

    def full(arr):
        return pl.BlockSpec(arr.shape, lambda i: (0, 0))

    packed = pl.pallas_call(
        _gradient_kernel,
        out_shape=jax.ShapeDtypeStruct((8, n_pad), jnp.float32),
        grid_spec=pltpu.PrefetchScalarGridSpec(
            num_scalar_prefetch=0,
            grid=(n_pad // tm,),
            in_specs=[
                pl.BlockSpec((2, tm), lambda i: (0, i)),
                full(w1t), full(b1t), full(w2blk), full(b2t),
                full(w3blk), full(b3p),
            ],
            out_specs=pl.BlockSpec((8, tm), lambda i: (0, i)),
            scratch_shapes=[
                pltpu.VMEM((5 * h, tm), jnp.float32),
                pltpu.VMEM((5 * h, tm), jnp.float32),
            ],
        ),
        compiler_params=pltpu.CompilerParams(
            dimension_semantics=("parallel",)),
    )(tx, w1t, b1t, w2blk, b2t, w3blk, b3p)

    # Back to the module's (N, 1) column-vector convention.
    u = packed[0, :n][:, None]
    du_dt = packed[1, :n][:, None]
    du_dx = packed[2, :n][:, None]
    d2u_dt2 = packed[3, :n][:, None]
    d2u_dx2 = packed[4, :n][:, None]
    return u, du_dt, du_dx, d2u_dt2, d2u_dx2


def init_params(key, hidden=H):
    """Deterministic init of the wrapped MLP: 2 -> hidden -> hidden -> 1."""
    k1, k2, k3 = jax.random.split(key, 3)
    w1 = jax.random.normal(k1, (2, hidden), jnp.float32) / jnp.sqrt(2.0)
    b1 = jnp.zeros((1, hidden), jnp.float32)
    w2 = jax.random.normal(k2, (hidden, hidden), jnp.float32) / jnp.sqrt(hidden)
    b2 = jnp.zeros((1, hidden), jnp.float32)
    w3 = jax.random.normal(k3, (hidden, 1), jnp.float32) / jnp.sqrt(hidden)
    b3 = jnp.zeros((1, 1), jnp.float32)
    return (w1, b1, w2, b2, w3, b3)


def _u_scalar(tv, xv, params):
    """Pure-JAX scalar reference model (for autodiff cross-check)."""
    w1, b1, w2, b2, w3, b3 = params
    inp = jnp.stack([tv, xv])[None, :]            # (1, 2)
    a1 = jnp.tanh(inp @ w1 + b1)
    a2 = jnp.tanh(a1 @ w2 + b2)
    return (a2 @ w3 + b3)[0, 0]


if __name__ == "__main__":
    key = jax.random.PRNGKey(0)
    kp, kt, kx = jax.random.split(key, 3)

    params = init_params(kp)

    N = 1024  # two grid steps at the default tm=512 (keeps both v7x TCs busy)
    t = jax.random.uniform(kt, (N, 1), jnp.float32)
    x = jax.random.uniform(kx, (N, 1), jnp.float32)

    u, du_dt, du_dx, d2u_dt2, d2u_dx2 = jax.block_until_ready(
        gradient_layer(t, x, params))

    # Reference via JAX autodiff (mirrors torch.autograd.grad semantics).
    ts, xs = t[:, 0], x[:, 0]
    u_fn = lambda a, b: _u_scalar(a, b, params)
    u_ref = jax.vmap(u_fn)(ts, xs)[:, None]
    dut_ref = jax.vmap(jax.grad(u_fn, argnums=0))(ts, xs)[:, None]
    dux_ref = jax.vmap(jax.grad(u_fn, argnums=1))(ts, xs)[:, None]
    d2ut_ref = jax.vmap(jax.grad(jax.grad(u_fn, 0), 0))(ts, xs)[:, None]
    d2ux_ref = jax.vmap(jax.grad(jax.grad(u_fn, 1), 1))(ts, xs)[:, None]

    for got, ref in [(u, u_ref), (du_dt, dut_ref), (du_dx, dux_ref),
                     (d2u_dt2, d2ut_ref), (d2u_dx2, d2ux_ref)]:
        assert jnp.allclose(got, ref, rtol=1e-4, atol=3e-5), (
            float(jnp.max(jnp.abs(got - ref))))

    print("KERNEL_OK")
</pallas_src>

<mosaic_0001>
module attributes {stable_mosaic.version = 11 : i64} {
  func.func @_gradient_kernel(%arg0: i32, %arg1: memref<2x512xf32, #tpu.memory_space<vmem>>, %arg2: memref<32x2xf32, #tpu.memory_space<vmem>>, %arg3: memref<32x1xf32, #tpu.memory_space<vmem>>, %arg4: memref<160x160xf32, #tpu.memory_space<vmem>>, %arg5: memref<32x1xf32, #tpu.memory_space<vmem>>, %arg6: memref<8x160xf32, #tpu.memory_space<vmem>>, %arg7: memref<8x1xf32, #tpu.memory_space<vmem>>, %arg8: memref<8x512xf32, #tpu.memory_space<vmem>>, %arg9: memref<160x512xf32, #tpu.memory_space<vmem>>, %arg10: memref<160x512xf32, #tpu.memory_space<vmem>>) attributes {dimension_semantics = [#tpu.dimension_semantics<parallel>], iteration_bounds = array<i64: 2>, scalar_prefetch = 0 : i64, scratch_operands = 2 : i64, tpu.core_type = #tpu.core_type<tc>, window_params = [{transform_indices = @transform_0, window_bounds = array<i64: 2, 512>}, {pipeline_mode = #tpu.pipeline_mode<synchronous>, transform_indices = @transform_1, window_bounds = array<i64: 32, 2>}, {pipeline_mode = #tpu.pipeline_mode<synchronous>, transform_indices = @transform_2, window_bounds = array<i64: 32, 1>}, {pipeline_mode = #tpu.pipeline_mode<synchronous>, transform_indices = @transform_3, window_bounds = array<i64: 160, 160>}, {pipeline_mode = #tpu.pipeline_mode<synchronous>, transform_indices = @transform_4, window_bounds = array<i64: 32, 1>}, {pipeline_mode = #tpu.pipeline_mode<synchronous>, transform_indices = @transform_5, window_bounds = array<i64: 8, 160>}, {pipeline_mode = #tpu.pipeline_mode<synchronous>, transform_indices = @transform_6, window_bounds = array<i64: 8, 1>}, {transform_indices = @transform_7, window_bounds = array<i64: 8, 512>}]} {
    %c0 = arith.constant 0 : index
    %c0_0 = arith.constant 0 : index
    %0 = vector.load %arg1[%c0, %c0_0] : memref<2x512xf32, #tpu.memory_space<vmem>>, vector<2x512xf32>
    %c0_1 = arith.constant 0 : index
    %c0_2 = arith.constant 0 : index
    %1 = vector.load %arg2[%c0_1, %c0_2] : memref<32x2xf32, #tpu.memory_space<vmem>>, vector<32x2xf32>
    %c0_3 = arith.constant 0 : index
    %c0_4 = arith.constant 0 : index
    %2 = vector.load %arg3[%c0_3, %c0_4] : memref<32x1xf32, #tpu.memory_space<vmem>>, vector<32x1xf32>
    %cst = arith.constant dense<0.000000e+00> : vector<32x512xf32>
    %3 = tpu.matmul %1, %0, %cst {dimension_numbers = #tpu.dot_dimension_numbers<[1], [0], [0], [1], [0, 0, 1, 1], [], []>} : vector<32x2xf32>, vector<2x512xf32>, vector<32x512xf32> -> vector<32x512xf32>
    %4 = vector.broadcast %2 : vector<32x1xf32> to vector<32x512xf32>
    %5 = arith.addf %3, %4 : vector<32x512xf32>
    %6 = math.tanh %5 : vector<32x512xf32>
    %7 = arith.mulf %6, %6 : vector<32x512xf32>
    %cst_5 = arith.constant 1.000000e+00 : f32
    %8 = vector.broadcast %cst_5 : f32 to vector<32x512xf32>
    %9 = arith.subf %8, %7 : vector<32x512xf32>
    %cst_6 = arith.constant -2.000000e+00 : f32
    %10 = vector.broadcast %cst_6 : f32 to vector<32x512xf32>
    %11 = arith.mulf %10, %6 : vector<32x512xf32>
    %12 = arith.mulf %11, %9 : vector<32x512xf32>
    %13 = vector.extract_strided_slice %1 {offsets = [0, 0], sizes = [32, 1], strides = [1, 1]} : vector<32x2xf32> to vector<32x1xf32>
    %14 = vector.extract_strided_slice %1 {offsets = [0, 1], sizes = [32, 1], strides = [1, 1]} : vector<32x2xf32> to vector<32x1xf32>
    %c0_7 = arith.constant 0 : index
    %c0_8 = arith.constant 0 : index
    %15 = vector.load %arg9[%c0_7, %c0_8] : memref<160x512xf32, #tpu.memory_space<vmem>>, vector<32x512xf32>
    tpu.vector_store %arg9[%c0_7, %c0_8], %6 {strides = array<i32>} : memref<160x512xf32, #tpu.memory_space<vmem>>, vector<32x512xf32>,
    %16 = vector.broadcast %13 : vector<32x1xf32> to vector<32x512xf32>
    %17 = arith.mulf %9, %16 : vector<32x512xf32>
    %c32 = arith.constant 32 : index
    %c0_9 = arith.constant 0 : index
    %18 = vector.load %arg9[%c32, %c0_9] : memref<160x512xf32, #tpu.memory_space<vmem>>, vector<32x512xf32>
    tpu.vector_store %arg9[%c32, %c0_9], %17 {strides = array<i32>} : memref<160x512xf32, #tpu.memory_space<vmem>>, vector<32x512xf32>,
    %19 = vector.broadcast %14 : vector<32x1xf32> to vector<32x512xf32>
    %20 = arith.mulf %9, %19 : vector<32x512xf32>
    %c64 = arith.constant 64 : index
    %c0_10 = arith.constant 0 : index
    %21 = vector.load %arg9[%c64, %c0_10] : memref<160x512xf32, #tpu.memory_space<vmem>>, vector<32x512xf32>
    tpu.vector_store %arg9[%c64, %c0_10], %20 {strides = array<i32>} : memref<160x512xf32, #tpu.memory_space<vmem>>, vector<32x512xf32>,
    %22 = arith.mulf %13, %13 : vector<32x1xf32>
    %23 = vector.broadcast %22 : vector<32x1xf32> to vector<32x512xf32>
    %24 = arith.mulf %12, %23 : vector<32x512xf32>
    %c96 = arith.constant 96 : index
    %c0_11 = arith.constant 0 : index
    %25 = vector.load %arg9[%c96, %c0_11] : memref<160x512xf32, #tpu.memory_space<vmem>>, vector<32x512xf32>
    tpu.vector_store %arg9[%c96, %c0_11], %24 {strides = array<i32>} : memref<160x512xf32, #tpu.memory_space<vmem>>, vector<32x512xf32>,
    %26 = arith.mulf %14, %14 : vector<32x1xf32>
    %27 = vector.broadcast %26 : vector<32x1xf32> to vector<32x512xf32>
    %28 = arith.mulf %12, %27 : vector<32x512xf32>
    %c128 = arith.constant 128 : index
    %c0_12 = arith.constant 0 : index
    %29 = vector.load %arg9[%c128, %c0_12] : memref<160x512xf32, #tpu.memory_space<vmem>>, vector<32x512xf32>
    tpu.vector_store %arg9[%c128, %c0_12], %28 {strides = array<i32>} : memref<160x512xf32, #tpu.memory_space<vmem>>, vector<32x512xf32>,
    %c0_13 = arith.constant 0 : index
    %c0_14 = arith.constant 0 : index
    %30 = vector.load %arg4[%c0_13, %c0_14] : memref<160x160xf32, #tpu.memory_space<vmem>>, vector<160x160xf32>
    %c0_15 = arith.constant 0 : index
    %c0_16 = arith.constant 0 : index
    %31 = vector.load %arg9[%c0_15, %c0_16] : memref<160x512xf32, #tpu.memory_space<vmem>>, vector<160x512xf32>
    %cst_17 = arith.constant dense<0.000000e+00> : vector<160x512xf32>
    %32 = tpu.matmul %30, %31, %cst_17 {dimension_numbers = #tpu.dot_dimension_numbers<[1], [0], [0], [1], [0, 0, 1, 1], [], []>} : vector<160x160xf32>, vector<160x512xf32>, vector<160x512xf32> -> vector<160x512xf32>
    %33 = vector.extract_strided_slice %32 {offsets = [0, 0], sizes = [32, 512], strides = [1, 1]} : vector<160x512xf32> to vector<32x512xf32>
    %c0_18 = arith.constant 0 : index
    %c0_19 = arith.constant 0 : index
    %34 = vector.load %arg5[%c0_18, %c0_19] : memref<32x1xf32, #tpu.memory_space<vmem>>, vector<32x1xf32>
    %35 = vector.broadcast %34 : vector<32x1xf32> to vector<32x512xf32>
    %36 = arith.addf %33, %35 : vector<32x512xf32>
    %37 = vector.extract_strided_slice %32 {offsets = [32, 0], sizes = [32, 512], strides = [1, 1]} : vector<160x512xf32> to vector<32x512xf32>
    %38 = vector.extract_strided_slice %32 {offsets = [64, 0], sizes = [32, 512], strides = [1, 1]} : vector<160x512xf32> to vector<32x512xf32>
    %39 = vector.extract_strided_slice %32 {offsets = [96, 0], sizes = [32, 512], strides = [1, 1]} : vector<160x512xf32> to vector<32x512xf32>
    %40 = vector.extract_strided_slice %32 {offsets = [128, 0], sizes = [32, 512], strides = [1, 1]} : vector<160x512xf32> to vector<32x512xf32>
    %41 = math.tanh %36 : vector<32x512xf32>
    %42 = arith.mulf %41, %41 : vector<32x512xf32>
    %cst_20 = arith.constant 1.000000e+00 : f32
    %43 = vector.broadcast %cst_20 : f32 to vector<32x512xf32>
    %44 = arith.subf %43, %42 : vector<32x512xf32>
    %cst_21 = arith.constant -2.000000e+00 : f32
    %45 = vector.broadcast %cst_21 : f32 to vector<32x512xf32>
    %46 = arith.mulf %45, %41 : vector<32x512xf32>
    %47 = arith.mulf %46, %44 : vector<32x512xf32>
    %c0_22 = arith.constant 0 : index
    %c0_23 = arith.constant 0 : index
    %48 = vector.load %arg10[%c0_22, %c0_23] : memref<160x512xf32, #tpu.memory_space<vmem>>, vector<32x512xf32>
    tpu.vector_store %arg10[%c0_22, %c0_23], %41 {strides = array<i32>} : memref<160x512xf32, #tpu.memory_space<vmem>>, vector<32x512xf32>,
    %49 = arith.mulf %44, %37 : vector<32x512xf32>
    %c32_24 = arith.constant 32 : index
    %c0_25 = arith.constant 0 : index
    %50 = vector.load %arg10[%c32_24, %c0_25] : memref<160x512xf32, #tpu.memory_space<vmem>>, vector<32x512xf32>
    tpu.vector_store %arg10[%c32_24, %c0_25], %49 {strides = array<i32>} : memref<160x512xf32, #tpu.memory_space<vmem>>, vector<32x512xf32>,
    %51 = arith.mulf %44, %38 : vector<32x512xf32>
    %c64_26 = arith.constant 64 : index
    %c0_27 = arith.constant 0 : index
    %52 = vector.load %arg10[%c64_26, %c0_27] : memref<160x512xf32, #tpu.memory_space<vmem>>, vector<32x512xf32>
    tpu.vector_store %arg10[%c64_26, %c0_27], %51 {strides = array<i32>} : memref<160x512xf32, #tpu.memory_space<vmem>>, vector<32x512xf32>,
    %53 = arith.mulf %44, %39 : vector<32x512xf32>
    %54 = arith.mulf %47, %37 : vector<32x512xf32>
    %55 = arith.mulf %54, %37 : vector<32x512xf32>
    %56 = arith.addf %53, %55 : vector<32x512xf32>
    %c96_28 = arith.constant 96 : index
    %c0_29 = arith.constant 0 : index
    %57 = vector.load %arg10[%c96_28, %c0_29] : memref<160x512xf32, #tpu.memory_space<vmem>>, vector<32x512xf32>
    tpu.vector_store %arg10[%c96_28, %c0_29], %56 {strides = array<i32>} : memref<160x512xf32, #tpu.memory_space<vmem>>, vector<32x512xf32>,
    %58 = arith.mulf %44, %40 : vector<32x512xf32>
    %59 = arith.mulf %47, %38 : vector<32x512xf32>
    %60 = arith.mulf %59, %38 : vector<32x512xf32>
    %61 = arith.addf %58, %60 : vector<32x512xf32>
    %c128_30 = arith.constant 128 : index
    %c0_31 = arith.constant 0 : index
    %62 = vector.load %arg10[%c128_30, %c0_31] : memref<160x512xf32, #tpu.memory_space<vmem>>, vector<32x512xf32>
    tpu.vector_store %arg10[%c128_30, %c0_31], %61 {strides = array<i32>} : memref<160x512xf32, #tpu.memory_space<vmem>>, vector<32x512xf32>,
    %c0_32 = arith.constant 0 : index
    %c0_33 = arith.constant 0 : index
    %63 = vector.load %arg6[%c0_32, %c0_33] : memref<8x160xf32, #tpu.memory_space<vmem>>, vector<8x160xf32>
    %c0_34 = arith.constant 0 : index
    %c0_35 = arith.constant 0 : index
    %64 = vector.load %arg10[%c0_34, %c0_35] : memref<160x512xf32, #tpu.memory_space<vmem>>, vector<160x512xf32>
    %cst_36 = arith.constant dense<0.000000e+00> : vector<8x512xf32>
    %65 = tpu.matmul %63, %64, %cst_36 {dimension_numbers = #tpu.dot_dimension_numbers<[1], [0], [0], [1], [0, 0, 1, 1], [], []>} : vector<8x160xf32>, vector<160x512xf32>, vector<8x512xf32> -> vector<8x512xf32>
    %c0_37 = arith.constant 0 : index
    %c0_38 = arith.constant 0 : index
    %66 = vector.load %arg7[%c0_37, %c0_38] : memref<8x1xf32, #tpu.memory_space<vmem>>, vector<8x1xf32>
    %67 = vector.broadcast %66 : vector<8x1xf32> to vector<8x512xf32>
    %68 = arith.addf %65, %67 : vector<8x512xf32>
    %c0_39 = arith.constant 0 : index
    %c0_40 = arith.constant 0 : index
    %69 = vector.load %arg8[%c0_39, %c0_40] : memref<8x512xf32, #tpu.memory_space<vmem>>, vector<8x512xf32>
    tpu.vector_store %arg8[%c0_39, %c0_40], %68 {strides = array<i32>} : memref<8x512xf32, #tpu.memory_space<vmem>>, vector<8x512xf32>,
    return
  }
  func.func @transform_0(%arg0: i32) -> (i32, i32) {
    %c0_i32 = arith.constant 0 : i32
    %c0_i32_0 = arith.constant 0 : i32
    return %c0_i32, %arg0 : i32, i32
  }
  func.func @transform_1(%arg0: i32) -> (i32, i32) {
    %c0_i32 = arith.constant 0 : i32
    %c0_i32_0 = arith.constant 0 : i32
    %c0_i32_1 = arith.constant 0 : i32
    return %c0_i32, %c0_i32_0 : i32, i32
  }
  func.func @transform_2(%arg0: i32) -> (i32, i32) {
    %c0_i32 = arith.constant 0 : i32
    %c0_i32_0 = arith.constant 0 : i32
    %c0_i32_1 = arith.constant 0 : i32
    return %c0_i32, %c0_i32_0 : i32, i32
  }
  func.func @transform_3(%arg0: i32) -> (i32, i32) {
    %c0_i32 = arith.constant 0 : i32
    %c0_i32_0 = arith.constant 0 : i32
    %c0_i32_1 = arith.constant 0 : i32
    return %c0_i32, %c0_i32_0 : i32, i32
  }
  func.func @transform_4(%arg0: i32) -> (i32, i32) {
    %c0_i32 = arith.constant 0 : i32
    %c0_i32_0 = arith.constant 0 : i32
    %c0_i32_1 = arith.constant 0 : i32
    return %c0_i32, %c0_i32_0 : i32, i32
  }
  func.func @transform_5(%arg0: i32) -> (i32, i32) {
    %c0_i32 = arith.constant 0 : i32
    %c0_i32_0 = arith.constant 0 : i32
    %c0_i32_1 = arith.constant 0 : i32
    return %c0_i32, %c0_i32_0 : i32, i32
  }
  func.func @transform_6(%arg0: i32) -> (i32, i32) {
    %c0_i32 = arith.constant 0 : i32
    %c0_i32_0 = arith.constant 0 : i32
    %c0_i32_1 = arith.constant 0 : i32
    return %c0_i32, %c0_i32_0 : i32, i32
  }
  func.func @transform_7(%arg0: i32) -> (i32, i32) {
    %c0_i32 = arith.constant 0 : i32
    %c0_i32_0 = arith.constant 0 : i32
    return %c0_i32, %arg0 : i32, i32
  }
}

</mosaic_0001>

<llo_original>
// kernel: gradient_layer.1
$region0: #{gradient_layer.1}
  #allocation0 [shape = 'u32[]', space=smem, size = 0x4, offset = 0x4, fixed_abs, tag = 'smem constant byte address 0x4 - core index']
  #allocation1 [shape = 'u32[72,128]{1,0:T(1,128)}', space=vmem, size = 0x9000, scoped, tag = 'internal scratch']
  #allocation2 [shape = 'f32[160,512]{1,0:T(8,128)}', space=vmem, size = 0x50000, scoped, tag = 'scratch operand']
  #allocation3 [shape = 'f32[160,512]{1,0:T(8,128)}', space=vmem, size = 0x50000, scoped, tag = 'scratch operand']
  %s0 = inlined_call_operand.vmem [shape: f32[2,1024], index: 0, kind: input, shape index: {}]
  %s1 = inlined_call_operand.vmem [shape: f32[32,2], index: 1, kind: input, shape index: {}]
  %s2 = inlined_call_operand.vmem [shape: f32[32,1], index: 2, kind: input, shape index: {}]
  %s3 = inlined_call_operand.vmem [shape: f32[160,160], index: 3, kind: input, shape index: {}]
  %s4 = inlined_call_operand.vmem [shape: f32[32,1], index: 4, kind: input, shape index: {}]
  %s5 = inlined_call_operand.vmem [shape: f32[8,160], index: 5, kind: input, shape index: {}]
  %s6 = inlined_call_operand.vmem [shape: f32[8,1], index: 6, kind: input, shape index: {}]
  %s7 = inlined_call_operand.vmem [shape: f32[8,1024], index: 7, kind: output, shape index: {}]
  %s8 = sld [smem:[#allocation0]]
  $region61: #{gradient_layer.1} parent=0
    _
  %s10 = ssub.s32 1, %s8
  %s11 = scalar_select 0, %s10, %s8
  loop: start=0, step=1, limit=4
  $region2: #{gradient_layer.1} parent=0 // loop_pre_header
    _
  $region3: #{gradient_layer.1} parent=0 // loop_header
    %s13 = sphi 0, %s17
    %p14 = scmp.ge.s32.totalorder %s13, 4
    %s23 = sphi 0, %s25
    %s26 = sphi 0, %s23
    %s27 = sphi 0, %s26
    %s43 = sphi 0, %s27
    %s47 = sphi 0, %s47
    %s49 = sphi 0, %s47
    %s50 = sphi 0, %s49
    %s64 = sphi 0, %s50
    %s68 = sphi 0, %s68
    %s70 = sphi 0, %s68
    %s71 = sphi 0, %s70
    %s85 = sphi 0, %s71
    %s89 = sphi 0, %s89
    %s91 = sphi 0, %s89
    %s92 = sphi 0, %s91
    %s106 = sphi 0, %s92
    %s110 = sphi 0, %s110
    %s112 = sphi 0, %s110
    %s113 = sphi 0, %s112
    %s127 = sphi 0, %s113
    %s131 = sphi 0, %s131
    %s133 = sphi 0, %s131
    %s134 = sphi 0, %s133
    %s148 = sphi 0, %s134
    %s152 = sphi 0, %s152
    %s154 = sphi 0, %s152
    %s155 = sphi 0, %s154
    %s169 = sphi 0, %s155
    %s175 = sphi 0, %s177
    %s178 = sphi 0, %s175
    %s179 = sphi 0, %s178
    %s195 = sphi 0, %s179
  $region4: #{gradient_layer.1} parent=0 // loop_header_branch
    %16 = sbr.rel (%p14) target = $region8
  $region5: #{gradient_layer.1} parent=0 // loop_body
    %s18 = ssub.s32 %s13, 1
    %s19 = ssub.s32 %s13, 2
    %s20 = sadd.s32 %s13, 1
    %s21 = ssub.s32 %s13, %s20
    %p22 = scmp.eq.s32.totalorder %s21, 0
    %s24 = sadd.s32 %s23, 1
    %s25 = scalar_select %p22, %s23, %s24
    %p28 = pneg %p22
    %p29 = scmp.eq.s32.totalorder %s13, 1
    %p30 = por %p28, %p29
    %p31 = scmp.ne.s32.totalorder %s23, %s26
    %p32 = scmp.eq.s32.totalorder %s13, 0
    %p33 = por %p31, %p32
    %p34 = scmp.ne.s32.totalorder %s23, %s26
    %p35 = scmp.eq.s32.totalorder %s18, 1
    %p36 = por %p34, %p35
    %p37 = scmp.ne.s32.totalorder %s26, %s27
    %p38 = scmp.eq.s32.totalorder %s18, 0
    %p39 = por %p37, %p38
    %p40 = scmp.ne.s32.totalorder %s26, %s27
    %p41 = scmp.eq.s32.totalorder %s19, 1
    %p42 = por %p40, %p41
    %p44 = scmp.ne.s32.totalorder %s27, %s43
    %p45 = scmp.eq.s32.totalorder %s19, 0
    %p46 = por %p44, %p45
    %s48 = sadd.s32 %s47, 1
    %p51 = scmp.eq.s32.totalorder %s13, 1
    %p52 = scmp.ne.s32.totalorder %s47, %s49
    %p53 = scmp.eq.s32.totalorder %s13, 0
    %p54 = por %p52, %p53
    %p55 = scmp.ne.s32.totalorder %s47, %s49
    %p56 = scmp.eq.s32.totalorder %s18, 1
    %p57 = por %p55, %p56
    %p58 = scmp.ne.s32.totalorder %s49, %s50
    %p59 = scmp.eq.s32.totalorder %s18, 0
    %p60 = por %p58, %p59
    %p61 = scmp.ne.s32.totalorder %s49, %s50
    %p62 = scmp.eq.s32.totalorder %s19, 1
    %p63 = por %p61, %p62
    %p65 = scmp.ne.s32.totalorder %s50, %s64
    %p66 = scmp.eq.s32.totalorder %s19, 0
    %p67 = por %p65, %p66
    %s69 = sadd.s32 %s68, 1
    %p72 = scmp.eq.s32.totalorder %s13, 1
    %p73 = scmp.ne.s32.totalorder %s68, %s70
    %p74 = scmp.eq.s32.totalorder %s13, 0
    %p75 = por %p73, %p74
    %p76 = scmp.ne.s32.totalorder %s68, %s70
    %p77 = scmp.eq.s32.totalorder %s18, 1
    %p78 = por %p76, %p77
    %p79 = scmp.ne.s32.totalorder %s70, %s71
    %p80 = scmp.eq.s32.totalorder %s18, 0
    %p81 = por %p79, %p80
    %p82 = scmp.ne.s32.totalorder %s70, %s71
    %p83 = scmp.eq.s32.totalorder %s19, 1
    %p84 = por %p82, %p83
    %p86 = scmp.ne.s32.totalorder %s71, %s85
    %p87 = scmp.eq.s32.totalorder %s19, 0
    %p88 = por %p86, %p87
    %s90 = sadd.s32 %s89, 1
    %p93 = scmp.eq.s32.totalorder %s13, 1
    %p94 = scmp.ne.s32.totalorder %s89, %s91
    %p95 = scmp.eq.s32.totalorder %s13, 0
    %p96 = por %p94, %p95
    %p97 = scmp.ne.s32.totalorder %s89, %s91
    %p98 = scmp.eq.s32.totalorder %s18, 1
    %p99 = por %p97, %p98
    %p100 = scmp.ne.s32.totalorder %s91, %s92
    %p101 = scmp.eq.s32.totalorder %s18, 0
    %p102 = por %p100, %p101
    %p103 = scmp.ne.s32.totalorder %s91, %s92
    %p104 = scmp.eq.s32.totalorder %s19, 1
    %p105 = por %p103, %p104
    %p107 = scmp.ne.s32.totalorder %s92, %s106
    %p108 = scmp.eq.s32.totalorder %s19, 0
    %p109 = por %p107, %p108
    %s111 = sadd.s32 %s110, 1
    %p114 = scmp.eq.s32.totalorder %s13, 1
    %p115 = scmp.ne.s32.totalorder %s110, %s112
    %p116 = scmp.eq.s32.totalorder %s13, 0
    %p117 = por %p115, %p116
    %p118 = scmp.ne.s32.totalorder %s110, %s112
    %p119 = scmp.eq.s32.totalorder %s18, 1
    %p120 = por %p118, %p119
    %p121 = scmp.ne.s32.totalorder %s112, %s113
    %p122 = scmp.eq.s32.totalorder %s18, 0
    %p123 = por %p121, %p122
    %p124 = scmp.ne.s32.totalorder %s112, %s113
    %p125 = scmp.eq.s32.totalorder %s19, 1
    %p126 = por %p124, %p125
    %p128 = scmp.ne.s32.totalorder %s113, %s127
    %p129 = scmp.eq.s32.totalorder %s19, 0
    %p130 = por %p128, %p129
    %s132 = sadd.s32 %s131, 1
    %p135 = scmp.eq.s32.totalorder %s13, 1
    %p136 = scmp.ne.s32.totalorder %s131, %s133
    %p137 = scmp.eq.s32.totalorder %s13, 0
    %p138 = por %p136, %p137
    %p139 = scmp.ne.s32.totalorder %s131, %s133
    %p140 = scmp.eq.s32.totalorder %s18, 1
    %p141 = por %p139, %p140
    %p142 = scmp.ne.s32.totalorder %s133, %s134
    %p143 = scmp.eq.s32.totalorder %s18, 0
    %p144 = por %p142, %p143
    %p145 = scmp.ne.s32.totalorder %s133, %s134
    %p146 = scmp.eq.s32.totalorder %s19, 1
    %p147 = por %p145, %p146
    %p149 = scmp.ne.s32.totalorder %s134, %s148
    %p150 = scmp.eq.s32.totalorder %s19, 0
    %p151 = por %p149, %p150
    %s153 = sadd.s32 %s152, 1
    %p156 = scmp.eq.s32.totalorder %s13, 1
    %p157 = scmp.ne.s32.totalorder %s152, %s154
    %p158 = scmp.eq.s32.totalorder %s13, 0
    %p159 = por %p157, %p158
    %p160 = scmp.ne.s32.totalorder %s152, %s154
    %p161 = scmp.eq.s32.totalorder %s18, 1
    %p162 = por %p160, %p161
    %p163 = scmp.ne.s32.totalorder %s154, %s155
    %p164 = scmp.eq.s32.totalorder %s18, 0
    %p165 = por %p163, %p164
    %p166 = scmp.ne.s32.totalorder %s154, %s155
    %p167 = scmp.eq.s32.totalorder %s19, 1
    %p168 = por %p166, %p167
    %p170 = scmp.ne.s32.totalorder %s155, %s169
    %p171 = scmp.eq.s32.totalorder %s19, 0
    %p172 = por %p170, %p171
    %s173 = ssub.s32 %s13, %s20
    %p174 = scmp.eq.s32.totalorder %s173, 0
    %s176 = sadd.s32 %s175, 1
    %s177 = scalar_select %p174, %s175, %s176
    %p180 = pneg %p174
    %p181 = scmp.eq.s32.totalorder %s13, 1
    %p182 = por %p180, %p181
    %p183 = scmp.ne.s32.totalorder %s175, %s178
    %p184 = scmp.eq.s32.totalorder %s13, 0
    %p185 = por %p183, %p184
    %p186 = scmp.ne.s32.totalorder %s175, %s178
    %p187 = scmp.eq.s32.totalorder %s18, 1
    %p188 = por %p186, %p187
    %p189 = scmp.ne.s32.totalorder %s178, %s179
    %p190 = scmp.eq.s32.totalorder %s18, 0
    %p191 = por %p189, %p190
    %p192 = scmp.ne.s32.totalorder %s178, %s179
    %p193 = scmp.eq.s32.totalorder %s19, 1
    %p194 = por %p192, %p193
    %p196 = scmp.ne.s32.totalorder %s179, %s195
    %p197 = scmp.eq.s32.totalorder %s19, 0
    %p198 = por %p196, %p197
    %p199 = scmp.le.s32.totalorder 1, %s13
    %p200 = scmp.lt.s32.totalorder %s13, 3
    %p201 = pnand %p199, %p200
    %p202 = pneg %p201
    // Predicated region
    $region9: #{gradient_layer.1} parent=5 // pred_check
      _
    $region10: #{gradient_layer.1} parent=5 // pred_check_branch
      %204 = sbr.rel (%p201) target = $region12
    $region11: #{gradient_layer.1} parent=5 // pred_region
      %s205 = ssub.s32 %s13, 1
      // Predicated region
      $region13: #{gradient_layer.1} parent=11 // pred_check
        %p206 = pneg %p60
      $region14: #{gradient_layer.1} parent=11 // pred_check_branch
        %208 = sbr.rel (%p206) target = $region16
      $region15: #{gradient_layer.1} parent=11 // pred_region
        _
      $region16: #{gradient_layer.1} parent=11 // pred_fallthru
        _
      // Predicated region
      $region17: #{gradient_layer.1} parent=11 // pred_check
        %p209 = pneg %p81
      $region18: #{gradient_layer.1} parent=11 // pred_check_branch
        %211 = sbr.rel (%p209) target = $region20
      $region19: #{gradient_layer.1} parent=11 // pred_region
        _
      $region20: #{gradient_layer.1} parent=11 // pred_fallthru
        _
      // Predicated region
      $region21: #{gradient_layer.1} parent=11 // pred_check
        %p212 = pneg %p102
      $region22: #{gradient_layer.1} parent=11 // pred_check_branch
        %214 = sbr.rel (%p212) target = $region24
      $region23: #{gradient_layer.1} parent=11 // pred_region
        _
      $region24: #{gradient_layer.1} parent=11 // pred_fallthru
        _
      // Predicated region
      $region25: #{gradient_layer.1} parent=11 // pred_check
        %p215 = pneg %p123
      $region26: #{gradient_layer.1} parent=11 // pred_check_branch
        %217 = sbr.rel (%p215) target = $region28
      $region27: #{gradient_layer.1} parent=11 // pred_region
        _
      $region28: #{gradient_layer.1} parent=11 // pred_fallthru
        _
      // Predicated region
      $region29: #{gradient_layer.1} parent=11 // pred_check
        %p218 = pneg %p144
      $region30: #{gradient_layer.1} parent=11 // pred_check_branch
        %220 = sbr.rel (%p218) target = $region32
      $region31: #{gradient_layer.1} parent=11 // pred_region
        _
      $region32: #{gradient_layer.1} parent=11 // pred_fallthru
        _
      // Predicated region
      $region33: #{gradient_layer.1} parent=11 // pred_check
        %p221 = pneg %p165
      $region34: #{gradient_layer.1} parent=11 // pred_check_branch
        %223 = sbr.rel (%p221) target = $region36
      $region35: #{gradient_layer.1} parent=11 // pred_region
        _
      $region36: #{gradient_layer.1} parent=11 // pred_fallthru
        _
    $region12: #{gradient_layer.1} parent=5 // pred_fallthru
      _
    %p224 = scmp.lt.s32.totalorder %s13, 2
    // Predicated region
    $region37: #{gradient_layer.1} parent=5 // pred_check
      %p225 = pneg %p224
    $region38: #{gradient_layer.1} parent=5 // pred_check_branch
      %227 = sbr.rel (%p225) target = $region40
    $region39: #{gradient_layer.1} parent=5 // pred_region
      // Predicated region
      $region41: #{gradient_layer.1} parent=39 // pred_check
        %p228 = pneg %p33
      $region42: #{gradient_layer.1} parent=39 // pred_check_branch
        %230 = sbr.rel (%p228) target = $region44
      $region43: #{gradient_layer.1} parent=39 // pred_region
        %s231 = smul.u32 4, %s13
        %p232 = scmp.lt.s32.totalorder %s231, 7
        %s233 = scalar_select %p232, %s231, 7
        %s234 = smul.addr %s233, 2
        %s235 = scalar_lea.vmem %s0, %s234
        %s236 = smul.u32 4, %s13
      $region44: #{gradient_layer.1} parent=39 // pred_fallthru
        _
    $region40: #{gradient_layer.1} parent=5 // pred_fallthru
      _
    %p237 = scmp.le.s32.totalorder 1, %s13
    %p238 = scmp.lt.s32.totalorder %s13, 3
    %p239 = pnand %p237, %p238
    %p240 = pneg %p239
    // Predicated region
    $region45: #{gradient_layer.1} parent=5 // pred_check
      _
    $region46: #{gradient_layer.1} parent=5 // pred_check_branch
      %242 = sbr.rel (%p239) target = $region48
    $region47: #{gradient_layer.1} parent=5 // pred_region
      %s243 = ssub.s32 %s13, 1
      %s244 = smul.u32 4, %s18
      %p245 = scmp.lt.s32.totalorder %s244, 7
      %s246 = scalar_select %p245, %s244, 7
      %s247 = smul.addr %s246, 2
      %s248 = scalar_lea.vmem %s0, %s247
      %p249 = pneg %p39
      %p250 = pneg %p36
      %p251 = pneg %p60
      %p252 = pneg %p57
      %p253 = pneg %p81
      %p254 = pneg %p78
      %p255 = pneg %p102
      %p256 = pneg %p99
      %p257 = pneg %p123
      %p258 = pneg %p120
      %p259 = pneg %p144
      %p260 = pneg %p141
      %p261 = pneg %p165
      %p262 = pneg %p162
      %p263 = pneg %p191
      %p264 = pneg %p188
      %s265 = smul.u32 4, %s18
      %p266 = scmp.lt.s32.totalorder %s265, 7
      %s267 = scalar_select %p266, %s265, 7
      %s268 = smul.addr %s267, 8
      %s269 = scalar_lea.vmem %s7, %s268
      %s270 = smul.u32 4, %s18
      %p271 = scmp.lt.s32.totalorder %s270, 7
      %s272 = scalar_select %p271, %s270, 7
      %s273 = smul.addr %s272, 2
      %s274 = scalar_lea.vmem %s0, %s273
      %s275 = smul.u32 4, %s18
      %s276 = smul.u32 4, %s18
      %p277 = scmp.lt.s32.totalorder %s276, 7
      %s278 = scalar_select %p277, %s276, 7
      %s279 = smul.addr %s278, 8
      %s280 = scalar_lea.vmem %s7, %s279
      %s281 = smul.u32 4, %s18
      %v282 = vld [vmem:[%s274] sm:$0xff]
      %v283 = vld [vmem:[%s1] sm:$0xff]
      %v284 = vld [vmem:[%s1 + $0x8] sm:$0xff]
      %v285 = vld [vmem:[%s1 + $0x10] sm:$0xff]
      %v286 = vld [vmem:[%s1 + $0x18] sm:$0xff]
      %v287 = vld [vmem:[%s2] sm:$0xff]
      %v288 = vld [vmem:[%s2 + $0x8] sm:$0xff]
      %v289 = vld [vmem:[%s2 + $0x10] sm:$0xff]
      %v290 = vld [vmem:[%s2 + $0x18] sm:$0xff]
      %292 = vset.pattern.permute.xlu0 0
      %293 = vperm.xlu0 %292, %v287
      %v294 = vpop.permute.xlu0 %293
      %297 = vset.pattern.permute.xlu0 0
      %298 = vperm.xlu0 %297, %v288
      %v299 = vpop.permute.xlu0 %298
      %302 = vset.pattern.permute.xlu0 0
      %303 = vperm.xlu0 %302, %v289
      %v304 = vpop.permute.xlu0 %303
      %307 = vset.pattern.permute.xlu0 0
      %308 = vperm.xlu0 %307, %v290
      %v309 = vpop.permute.xlu0 %308
      %312 = vst [vmem:[#allocation1] ss:$4 sm:$0xff] %v282
      %v313 = vld.sshfl [vmem:[#allocation1] sm:$0xff pattern:$0x73625140]
      %v314 = vld.sshfl [vmem:[#allocation1 + $0x8] sm:$0xff pattern:$0x73625140]
      %v315 = vld.sshfl [vmem:[#allocation1 + $0x10] sm:$0xff pattern:$0x73625140]
      %v316 = vld.sshfl [vmem:[#allocation1 + $0x18] sm:$0xff pattern:$0x73625140]
      %vm317 = vcmask 15360
      %v319 = vsel %vm317, %v283, 0
      %v322 = vsel %vm317, %v284, 0
      %v325 = vsel %vm317, %v285, 0
      %v328 = vsel %vm317, %v286, 0
      %vm330 = vcmask 1041408
      %v331 = vsel %vm330, %v313, 0
      %v333 = vsel %vm330, %v314, 0
      %v335 = vsel %vm330, %v315, 0
      %v337 = vsel %vm330, %v316, 0
      %339 = vmatpush.msra.mxu0 0.0
      %340 = vmatpush.msra.mxu0 0.0
      %341 = vmatpush.msra.mxu0 0.0
      %342 = vmatpush.msra.mxu0 0.0
      %343 = vmatpush.msra.mxu0 0.0
      %344 = vmatpush.msra.mxu0 0.0
      %345 = vmatpush.msra.mxu0 0.0
      %346 = vmatpush.msra.mxu0 0.0
      %347 = vmatpush.msra.mxu0 0.0
      %348 = vmatpush.msra.mxu0 0.0
      %349 = vmatpush.msra.mxu0 0.0
      %350 = vmatpush.msra.mxu0 0.0
      %351 = vmatpush.msra.mxu0 0.0
      %352 = vmatpush.msra.mxu0 0.0
      %353 = vmatpush.msra.mxu0 0.0
      %354 = vmatpush.msra.mxu0 %v331
      %355 = vmatmul.f32.gmra.mxu0 %v319
      %v356 = vpop.f32.mrf.mxu0
      %v357 = vadd.f32 %v294, %v356
      %358 = vmatmul.f32.gmra.mxu0 %v322
      %v359 = vpop.f32.mrf.mxu0
      %v360 = vadd.f32 %v299, %v359
      %361 = vmatmul.f32.gmra.mxu0 %v325
      %v362 = vpop.f32.mrf.mxu0
      %v363 = vadd.f32 %v304, %v362
      %364 = vmatmul.f32.gmra.mxu0 %v328
      %v365 = vpop.f32.mrf.mxu0
      %v366 = vadd.f32 %v309, %v365
      %367 = vdwg.mxu0
      %368 = vmatpush.msra.mxu0 0.0
      %369 = vmatpush.msra.mxu0 0.0
      %370 = vmatpush.msra.mxu0 0.0
      %371 = vmatpush.msra.mxu0 0.0
      %372 = vmatpush.msra.mxu0 0.0
      %373 = vmatpush.msra.mxu0 0.0
      %374 = vmatpush.msra.mxu0 0.0
      %375 = vmatpush.msra.mxu0 0.0
      %376 = vmatpush.msra.mxu0 0.0
      %377 = vmatpush.msra.mxu0 0.0
      %378 = vmatpush.msra.mxu0 0.0
      %379 = vmatpush.msra.mxu0 0.0
      %380 = vmatpush.msra.mxu0 0.0
      %381 = vmatpush.msra.mxu0 0.0
      %382 = vmatpush.msra.mxu0 0.0
      %383 = vmatpush.msra.mxu0 %v333
      %384 = vmatmul.f32.gmra.mxu0 %v319
      %v385 = vpop.f32.mrf.mxu0
      %v386 = vadd.f32 %v294, %v385
      %387 = vmatmul.f32.gmra.mxu0 %v322
      %v388 = vpop.f32.mrf.mxu0
      %v389 = vadd.f32 %v299, %v388
      %390 = vmatmul.f32.gmra.mxu0 %v325
      %v391 = vpop.f32.mrf.mxu0
      %v392 = vadd.f32 %v304, %v391
      %393 = vmatmul.f32.gmra.mxu0 %v328
      %v394 = vpop.f32.mrf.mxu0
      %v395 = vadd.f32 %v309, %v394
      %396 = vdwg.mxu0
      %397 = vmatpush.msra.mxu0 0.0
      %398 = vmatpush.msra.mxu0 0.0
      %399 = vmatpush.msra.mxu0 0.0
      %400 = vmatpush.msra.mxu0 0.0
      %401 = vmatpush.msra.mxu0 0.0
      %402 = vmatpush.msra.mxu0 0.0
      %403 = vmatpush.msra.mxu0 0.0
      %404 = vmatpush.msra.mxu0 0.0
      %405 = vmatpush.msra.mxu0 0.0
      %406 = vmatpush.msra.mxu0 0.0
      %407 = vmatpush.msra.mxu0 0.0
      %408 = vmatpush.msra.mxu0 0.0
      %409 = vmatpush.msra.mxu0 0.0
      %410 = vmatpush.msra.mxu0 0.0
      %411 = vmatpush.msra.mxu0 0.0
      %412 = vmatpush.msra.mxu0 %v335
      %413 = vmatmul.f32.gmra.mxu0 %v319
      %v414 = vpop.f32.mrf.mxu0
      %v415 = vadd.f32 %v294, %v414
      %416 = vmatmul.f32.gmra.mxu0 %v322
      %v417 = vpop.f32.mrf.mxu0
      %v418 = vadd.f32 %v299, %v417
      %419 = vmatmul.f32.gmra.mxu0 %v325
      %v420 = vpop.f32.mrf.mxu0
      %v421 = vadd.f32 %v304, %v420
      %422 = vmatmul.f32.gmra.mxu0 %v328
      %v423 = vpop.f32.mrf.mxu0
      %v424 = vadd.f32 %v309, %v423
      %425 = vdwg.mxu0
      %426 = vmatpush.msra.mxu0 0.0
      %427 = vmatpush.msra.mxu0 0.0
      %428 = vmatpush.msra.mxu0 0.0
      %429 = vmatpush.msra.mxu0 0.0
      %430 = vmatpush.msra.mxu0 0.0
      %431 = vmatpush.msra.mxu0 0.0
      %432 = vmatpush.msra.mxu0 0.0
      %433 = vmatpush.msra.mxu0 0.0
      %434 = vmatpush.msra.mxu0 0.0
      %435 = vmatpush.msra.mxu0 0.0
      %436 = vmatpush.msra.mxu0 0.0
      %437 = vmatpush.msra.mxu0 0.0
      %438 = vmatpush.msra.mxu0 0.0
      %439 = vmatpush.msra.mxu0 0.0
      %440 = vmatpush.msra.mxu0 0.0
      %441 = vmatpush.msra.mxu0 %v337
      %442 = vmatmul.f32.gmra.mxu0 %v319
      %v443 = vpop.f32.mrf.mxu0
      %v444 = vadd.f32 %v294, %v443
      %445 = vmatmul.f32.gmra.mxu0 %v322
      %v446 = vpop.f32.mrf.mxu0
      %v447 = vadd.f32 %v299, %v446
      %448 = vmatmul.f32.gmra.mxu0 %v325
      %v449 = vpop.f32.mrf.mxu0
      %v450 = vadd.f32 %v304, %v449
      %451 = vmatmul.f32.gmra.mxu0 %v328
      %v452 = vpop.f32.mrf.mxu0
      %v453 = vadd.f32 %v309, %v452
      %454 = vdwg.mxu0
      %v455 = vtanh.pop %v357
      %v456 = vtanh.pop %v386
      %v457 = vtanh.pop %v415
      %v458 = vtanh.pop %v444
      %v459 = vtanh.pop %v360
      %v460 = vtanh.pop %v389
      %v461 = vtanh.pop %v418
      %v462 = vtanh.pop %v447
      %v463 = vtanh.pop %v363
      %v464 = vtanh.pop %v392
      %v465 = vtanh.pop %v421
      %v466 = vtanh.pop %v450
      %v467 = vtanh.pop %v366
      %v468 = vtanh.pop %v395
      %v469 = vtanh.pop %v424
      %v470 = vtanh.pop %v453
      %v471 = vmul.f32 %v455, %v455
      %v472 = vmul.f32 %v456, %v456
      %v473 = vmul.f32 %v457, %v457
      %v474 = vmul.f32 %v458, %v458
      %v475 = vmul.f32 %v459, %v459
      %v476 = vmul.f32 %v460, %v460
      %v477 = vmul.f32 %v461, %v461
      %v478 = vmul.f32 %v462, %v462
      %v479 = vmul.f32 %v463, %v463
      %v480 = vmul.f32 %v464, %v464
      %v481 = vmul.f32 %v465, %v465
      %v482 = vmul.f32 %v466, %v466
      %v483 = vmul.f32 %v467, %v467
      %v484 = vmul.f32 %v468, %v468
      %v485 = vmul.f32 %v469, %v469
      %v486 = vmul.f32 %v470, %v470
      %v487 = vsub.f32 1.0, %v471
      %v488 = vsub.f32 1.0, %v472
      %v489 = vsub.f32 1.0, %v473
      %v490 = vsub.f32 1.0, %v474
      %v491 = vsub.f32 1.0, %v475
      %v492 = vsub.f32 1.0, %v476
      %v493 = vsub.f32 1.0, %v477
      %v494 = vsub.f32 1.0, %v478
      %v495 = vsub.f32 1.0, %v479
      %v496 = vsub.f32 1.0, %v480
      %v497 = vsub.f32 1.0, %v481
      %v498 = vsub.f32 1.0, %v482
      %v499 = vsub.f32 1.0, %v483
      %v500 = vsub.f32 1.0, %v484
      %v501 = vsub.f32 1.0, %v485
      %v502 = vsub.f32 1.0, %v486
      %v503 = vmul.f32 %v455, -2.0
      %v504 = vmul.f32 %v456, -2.0
      %v505 = vmul.f32 %v457, -2.0
      %v506 = vmul.f32 %v458, -2.0
      %v507 = vmul.f32 %v459, -2.0
      %v508 = vmul.f32 %v460, -2.0
      %v509 = vmul.f32 %v461, -2.0
      %v510 = vmul.f32 %v462, -2.0
      %v511 = vmul.f32 %v463, -2.0
      %v512 = vmul.f32 %v464, -2.0
      %v513 = vmul.f32 %v465, -2.0
      %v514 = vmul.f32 %v466, -2.0
      %v515 = vmul.f32 %v467, -2.0
      %v516 = vmul.f32 %v468, -2.0
      %v517 = vmul.f32 %v469, -2.0
      %v518 = vmul.f32 %v470, -2.0
      %v519 = vmul.f32 %v503, %v487
      %v520 = vmul.f32 %v504, %v488
      %v521 = vmul.f32 %v505, %v489
      %v522 = vmul.f32 %v506, %v490
      %v523 = vmul.f32 %v507, %v491
      %v524 = vmul.f32 %v508, %v492
      %v525 = vmul.f32 %v509, %v493
      %v526 = vmul.f32 %v510, %v494
      %v527 = vmul.f32 %v511, %v495
      %v528 = vmul.f32 %v512, %v496
      %v529 = vmul.f32 %v513, %v497
      %v530 = vmul.f32 %v514, %v498
      %v531 = vmul.f32 %v515, %v499
      %v532 = vmul.f32 %v516, %v500
      %v533 = vmul.f32 %v517, %v501
      %v534 = vmul.f32 %v518, %v502
      %535 = vst [vmem:[#allocation2] sm:$0xff] %v455
      %536 = vst [vmem:[#allocation2 + $0x8] sm:$0xff] %v456
      %537 = vst [vmem:[#allocation2 + $0x10] sm:$0xff] %v457
      %538 = vst [vmem:[#allocation2 + $0x18] sm:$0xff] %v458
      %539 = vst [vmem:[#allocation2 + $0x20] sm:$0xff] %v459
      %540 = vst [vmem:[#allocation2 + $0x28] sm:$0xff] %v460
      %541 = vst [vmem:[#allocation2 + $0x30] sm:$0xff] %v461
      %542 = vst [vmem:[#allocation2 + $0x38] sm:$0xff] %v462
      %543 = vst [vmem:[#allocation2 + $0x40] sm:$0xff] %v463
      %544 = vst [vmem:[#allocation2 + $0x48] sm:$0xff] %v464
      %545 = vst [vmem:[#allocation2 + $0x50] sm:$0xff] %v465
      %546 = vst [vmem:[#allocation2 + $0x58] sm:$0xff] %v466
      %547 = vst [vmem:[#allocation2 + $0x60] sm:$0xff] %v467
      %548 = vst [vmem:[#allocation2 + $0x68] sm:$0xff] %v468
      %549 = vst [vmem:[#allocation2 + $0x70] sm:$0xff] %v469
      %550 = vst [vmem:[#allocation2 + $0x78] sm:$0xff] %v470
      %551 = vset.pattern.permute.xlu0 0
      %552 = vperm.xlu0 %551, %v283
      %v553 = vpop.permute.xlu0 %552
      %555 = vset.pattern.permute.xlu0 0
      %556 = vperm.xlu0 %555, %v284
      %v557 = vpop.permute.xlu0 %556
      %559 = vset.pattern.permute.xlu0 0
      %560 = vperm.xlu0 %559, %v285
      %v561 = vpop.permute.xlu0 %560
      %563 = vset.pattern.permute.xlu0 0
      %564 = vperm.xlu0 %563, %v286
      %v565 = vpop.permute.xlu0 %564
      %v567 = vmul.f32 %v487, %v553
      %v568 = vmul.f32 %v488, %v553
      %v569 = vmul.f32 %v489, %v553
      %v570 = vmul.f32 %v490, %v553
      %v571 = vmul.f32 %v491, %v557
      %v572 = vmul.f32 %v492, %v557
      %v573 = vmul.f32 %v493, %v557
      %v574 = vmul.f32 %v494, %v557
      %v575 = vmul.f32 %v495, %v561
      %v576 = vmul.f32 %v496, %v561
      %v577 = vmul.f32 %v497, %v561
      %v578 = vmul.f32 %v498, %v561
      %v579 = vmul.f32 %v499, %v565
      %v580 = vmul.f32 %v500, %v565
      %v581 = vmul.f32 %v501, %v565
      %v582 = vmul.f32 %v502, %v565
      %583 = vst [vmem:[#allocation2 + $0x80] sm:$0xff] %v567
      %584 = vst [vmem:[#allocation2 + $0x88] sm:$0xff] %v568
      %585 = vst [vmem:[#allocation2 + $0x90] sm:$0xff] %v569
      %586 = vst [vmem:[#allocation2 + $0x98] sm:$0xff] %v570
      %587 = vst [vmem:[#allocation2 + $0xa0] sm:$0xff] %v571
      %588 = vst [vmem:[#allocation2 + $0xa8] sm:$0xff] %v572
      %589 = vst [vmem:[#allocation2 + $0xb0] sm:$0xff] %v573
      %590 = vst [vmem:[#allocation2 + $0xb8] sm:$0xff] %v574
      %591 = vst [vmem:[#allocation2 + $0xc0] sm:$0xff] %v575
      %592 = vst [vmem:[#allocation2 + $0xc8] sm:$0xff] %v576
      %593 = vst [vmem:[#allocation2 + $0xd0] sm:$0xff] %v577
      %594 = vst [vmem:[#allocation2 + $0xd8] sm:$0xff] %v578
      %595 = vst [vmem:[#allocation2 + $0xe0] sm:$0xff] %v579
      %596 = vst [vmem:[#allocation2 + $0xe8] sm:$0xff] %v580
      %597 = vst [vmem:[#allocation2 + $0xf0] sm:$0xff] %v581
      %598 = vst [vmem:[#allocation2 + $0xf8] sm:$0xff] %v582
      %599 = vset.pattern.permute.xlu0 1
      %600 = vperm.xlu0 %599, %v283
      %v601 = vpop.permute.xlu0 %600
      %603 = vset.pattern.permute.xlu0 1
      %604 = vperm.xlu0 %603, %v284
      %v605 = vpop.permute.xlu0 %604
      %607 = vset.pattern.permute.xlu0 1
      %608 = vperm.xlu0 %607, %v285
      %v609 = vpop.permute.xlu0 %608
      %611 = vset.pattern.permute.xlu0 1
      %612 = vperm.xlu0 %611, %v286
      %v613 = vpop.permute.xlu0 %612
      %v615 = vmul.f32 %v487, %v601
      %v616 = vmul.f32 %v488, %v601
      %v617 = vmul.f32 %v489, %v601
      %v618 = vmul.f32 %v490, %v601
      %v619 = vmul.f32 %v491, %v605
      %v620 = vmul.f32 %v492, %v605
      %v621 = vmul.f32 %v493, %v605
      %v622 = vmul.f32 %v494, %v605
      %v623 = vmul.f32 %v495, %v609
      %v624 = vmul.f32 %v496, %v609
      %v625 = vmul.f32 %v497, %v609
      %v626 = vmul.f32 %v498, %v609
      %v627 = vmul.f32 %v499, %v613
      %v628 = vmul.f32 %v500, %v613
      %v629 = vmul.f32 %v501, %v613
      %v630 = vmul.f32 %v502, %v613
      %631 = vst [vmem:[#allocation2 + $0x100] sm:$0xff] %v615
      %632 = vst [vmem:[#allocation2 + $0x108] sm:$0xff] %v616
      %633 = vst [vmem:[#allocation2 + $0x110] sm:$0xff] %v617
      %634 = vst [vmem:[#allocation2 + $0x118] sm:$0xff] %v618
      %635 = vst [vmem:[#allocation2 + $0x120] sm:$0xff] %v619
      %636 = vst [vmem:[#allocation2 + $0x128] sm:$0xff] %v620
      %637 = vst [vmem:[#allocation2 + $0x130] sm:$0xff] %v621
      %638 = vst [vmem:[#allocation2 + $0x138] sm:$0xff] %v622
      %639 = vst [vmem:[#allocation2 + $0x140] sm:$0xff] %v623
      %640 = vst [vmem:[#allocation2 + $0x148] sm:$0xff] %v624
      %641 = vst [vmem:[#allocation2 + $0x150] sm:$0xff] %v625
      %642 = vst [vmem:[#allocation2 + $0x158] sm:$0xff] %v626
      %643 = vst [vmem:[#allocation2 + $0x160] sm:$0xff] %v627
      %644 = vst [vmem:[#allocation2 + $0x168] sm:$0xff] %v628
      %645 = vst [vmem:[#allocation2 + $0x170] sm:$0xff] %v629
      %646 = vst [vmem:[#allocation2 + $0x178] sm:$0xff] %v630
      %v647 = vmul.f32 %v283, %v283
      %v648 = vmul.f32 %v284, %v284
      %v649 = vmul.f32 %v285, %v285
      %v650 = vmul.f32 %v286, %v286
      %652 = vset.pattern.permute.xlu0 0
      %653 = vperm.xlu0 %652, %v647
      %v654 = vpop.permute.xlu0 %653
      %657 = vset.pattern.permute.xlu0 0
      %658 = vperm.xlu0 %657, %v648
      %v659 = vpop.permute.xlu0 %658
      %662 = vset.pattern.permute.xlu0 0
      %663 = vperm.xlu0 %662, %v649
      %v664 = vpop.permute.xlu0 %663
      %667 = vset.pattern.permute.xlu0 0
      %668 = vperm.xlu0 %667, %v650
      %v669 = vpop.permute.xlu0 %668
      %v671 = vmul.f32 %v519, %v654
      %v672 = vmul.f32 %v520, %v654
      %v673 = vmul.f32 %v521, %v654
      %v674 = vmul.f32 %v522, %v654
      %v675 = vmul.f32 %v523, %v659
      %v676 = vmul.f32 %v524, %v659
      %v677 = vmul.f32 %v525, %v659
      %v678 = vmul.f32 %v526, %v659
      %v679 = vmul.f32 %v527, %v664
      %v680 = vmul.f32 %v528, %v664
      %v681 = vmul.f32 %v529, %v664
      %v682 = vmul.f32 %v530, %v664
      %v683 = vmul.f32 %v531, %v669
      %v684 = vmul.f32 %v532, %v669
      %v685 = vmul.f32 %v533, %v669
      %v686 = vmul.f32 %v534, %v669
      %687 = vst [vmem:[#allocation2 + $0x180] sm:$0xff] %v671
      %688 = vst [vmem:[#allocation2 + $0x188] sm:$0xff] %v672
      %689 = vst [vmem:[#allocation2 + $0x190] sm:$0xff] %v673
      %690 = vst [vmem:[#allocation2 + $0x198] sm:$0xff] %v674
      %691 = vst [vmem:[#allocation2 + $0x1a0] sm:$0xff] %v675
      %692 = vst [vmem:[#allocation2 + $0x1a8] sm:$0xff] %v676
      %693 = vst [vmem:[#allocation2 + $0x1b0] sm:$0xff] %v677
      %694 = vst [vmem:[#allocation2 + $0x1b8] sm:$0xff] %v678
      %695 = vst [vmem:[#allocation2 + $0x1c0] sm:$0xff] %v679
      %696 = vst [vmem:[#allocation2 + $0x1c8] sm:$0xff] %v680
      %697 = vst [vmem:[#allocation2 + $0x1d0] sm:$0xff] %v681
      %698 = vst [vmem:[#allocation2 + $0x1d8] sm:$0xff] %v682
      %699 = vst [vmem:[#allocation2 + $0x1e0] sm:$0xff] %v683
      %700 = vst [vmem:[#allocation2 + $0x1e8] sm:$0xff] %v684
      %701 = vst [vmem:[#allocation2 + $0x1f0] sm:$0xff] %v685
      %702 = vst [vmem:[#allocation2 + $0x1f8] sm:$0xff] %v686
      %703 = vset.pattern.permute.xlu0 1
      %704 = vperm.xlu0 %703, %v647
      %v705 = vpop.permute.xlu0 %704
      %707 = vset.pattern.permute.xlu0 1
      %708 = vperm.xlu0 %707, %v648
      %v709 = vpop.permute.xlu0 %708
      %711 = vset.pattern.permute.xlu0 1
      %712 = vperm.xlu0 %711, %v649
      %v713 = vpop.permute.xlu0 %712
      %715 = vset.pattern.permute.xlu0 1
      %716 = vperm.xlu0 %715, %v650
      %v717 = vpop.permute.xlu0 %716
      %v719 = vmul.f32 %v519, %v705
      %v720 = vmul.f32 %v520, %v705
      %v721 = vmul.f32 %v521, %v705
      %v722 = vmul.f32 %v522, %v705
      %v723 = vmul.f32 %v523, %v709
      %v724 = vmul.f32 %v524, %v709
      %v725 = vmul.f32 %v525, %v709
      %v726 = vmul.f32 %v526, %v709
      %v727 = vmul.f32 %v527, %v713
      %v728 = vmul.f32 %v528, %v713
      %v729 = vmul.f32 %v529, %v713
      %v730 = vmul.f32 %v530, %v713
      %v731 = vmul.f32 %v531, %v717
      %v732 = vmul.f32 %v532, %v717
      %v733 = vmul.f32 %v533, %v717
      %v734 = vmul.f32 %v534, %v717
      %735 = vst [vmem:[#allocation2 + $0x200] sm:$0xff] %v719
      %736 = vst [vmem:[#allocation2 + $0x208] sm:$0xff] %v720
      %737 = vst [vmem:[#allocation2 + $0x210] sm:$0xff] %v721
      %738 = vst [vmem:[#allocation2 + $0x218] sm:$0xff] %v722
      %739 = vst [vmem:[#allocation2 + $0x220] sm:$0xff] %v723
      %740 = vst [vmem:[#allocation2 + $0x228] sm:$0xff] %v724
      %741 = vst [vmem:[#allocation2 + $0x230] sm:$0xff] %v725
      %742 = vst [vmem:[#allocation2 + $0x238] sm:$0xff] %v726
      %743 = vst [vmem:[#allocation2 + $0x240] sm:$0xff] %v727
      %744 = vst [vmem:[#allocation2 + $0x248] sm:$0xff] %v728
      %745 = vst [vmem:[#allocation2 + $0x250] sm:$0xff] %v729
      %746 = vst [vmem:[#allocation2 + $0x258] sm:$0xff] %v730
      %747 = vst [vmem:[#allocation2 + $0x260] sm:$0xff] %v731
      %748 = vst [vmem:[#allocation2 + $0x268] sm:$0xff] %v732
      %749 = vst [vmem:[#allocation2 + $0x270] sm:$0xff] %v733
      %750 = vst [vmem:[#allocation2 + $0x278] sm:$0xff] %v734
      %v751 = vld [vmem:[%s3] sm:$0xff]
      %v752 = vld [vmem:[%s3 + $0x8] sm:$0xff]
      %v753 = vld [vmem:[%s3 + $0x10] sm:$0xff]
      %v754 = vld [vmem:[%s3 + $0x18] sm:$0xff]
      %v755 = vld [vmem:[%s3 + $0x20] sm:$0xff]
      %v756 = vld [vmem:[%s3 + $0x28] sm:$0xff]
      %v757 = vld [vmem:[%s3 + $0x30] sm:$0xff]
      %v758 = vld [vmem:[%s3 + $0x38] sm:$0xff]
      %v759 = vld [vmem:[%s3 + $0x40] sm:$0xff]
      %v760 = vld [vmem:[%s3 + $0x48] sm:$0xff]
      %v761 = vld [vmem:[%s3 + $0x50] sm:$0xff]
      %v762 = vld [vmem:[%s3 + $0x58] sm:$0xff]
      %v763 = vld [vmem:[%s3 + $0x60] sm:$0xff]
      %v764 = vld [vmem:[%s3 + $0x68] sm:$0xff]
      %v765 = vld [vmem:[%s3 + $0x70] sm:$0xff]
      %v766 = vld [vmem:[%s3 + $0x78] sm:$0xff]
      %v767 = vld [vmem:[%s3 + $0x80] sm:$0xff]
      %v768 = vld [vmem:[%s3 + $0x88] sm:$0xff]
      %v769 = vld [vmem:[%s3 + $0x90] sm:$0xff]
      %v770 = vld [vmem:[%s3 + $0x98] sm:$0xff]
      %v771 = vld [vmem:[%s3 + $0xa0] sm:$0xff]
      %v772 = vld [vmem:[%s3 + $0xa8] sm:$0xff]
      %v773 = vld [vmem:[%s3 + $0xb0] sm:$0xff]
      %v774 = vld [vmem:[%s3 + $0xb8] sm:$0xff]
      %v775 = vld [vmem:[%s3 + $0xc0] sm:$0xff]
      %v776 = vld [vmem:[%s3 + $0xc8] sm:$0xff]
      %v777 = vld [vmem:[%s3 + $0xd0] sm:$0xff]
      %v778 = vld [vmem:[%s3 + $0xd8] sm:$0xff]
      %v779 = vld [vmem:[%s3 + $0xe0] sm:$0xff]
      %v780 = vld [vmem:[%s3 + $0xe8] sm:$0xff]
      %v781 = vld [vmem:[%s3 + $0xf0] sm:$0xff]
      %v782 = vld [vmem:[%s3 + $0xf8] sm:$0xff]
      %v783 = vld [vmem:[%s3 + $0x100] sm:$0xff]
      %v784 = vld [vmem:[%s3 + $0x108] sm:$0xff]
      %v785 = vld [vmem:[%s3 + $0x110] sm:$0xff]
      %v786 = vld [vmem:[%s3 + $0x118] sm:$0xff]
      %v787 = vld [vmem:[%s3 + $0x120] sm:$0xff]
      %v788 = vld [vmem:[%s3 + $0x128] sm:$0xff]
      %v789 = vld [vmem:[%s3 + $0x130] sm:$0xff]
      %v790 = vld [vmem:[%s3 + $0x138] sm:$0xff]
      %v791 = vld [vmem:[#allocation2] sm:$0xff]
      %v792 = vld [vmem:[#allocation2 + $0x8] sm:$0xff]
      %v793 = vld [vmem:[#allocation2 + $0x10] sm:$0xff]
      %v794 = vld [vmem:[#allocation2 + $0x18] sm:$0xff]
      %v795 = vld [vmem:[#allocation2 + $0x20] sm:$0xff]
      %v796 = vld [vmem:[#allocation2 + $0x28] sm:$0xff]
      %v797 = vld [vmem:[#allocation2 + $0x30] sm:$0xff]
      %v798 = vld [vmem:[#allocation2 + $0x38] sm:$0xff]
      %v799 = vld [vmem:[#allocation2 + $0x40] sm:$0xff]
      %v800 = vld [vmem:[#allocation2 + $0x48] sm:$0xff]
      %v801 = vld [vmem:[#allocation2 + $0x50] sm:$0xff]
      %v802 = vld [vmem:[#allocation2 + $0x58] sm:$0xff]
      %v803 = vld [vmem:[#allocation2 + $0x60] sm:$0xff]
      %v804 = vld [vmem:[#allocation2 + $0x68] sm:$0xff]
      %v805 = vld [vmem:[#allocation2 + $0x70] sm:$0xff]
      %v806 = vld [vmem:[#allocation2 + $0x78] sm:$0xff]
      %v807 = vld [vmem:[#allocation2 + $0x80] sm:$0xff]
      %v808 = vld [vmem:[#allocation2 + $0x88] sm:$0xff]
      %v809 = vld [vmem:[#allocation2 + $0x90] sm:$0xff]
      %v810 = vld [vmem:[#allocation2 + $0x98] sm:$0xff]
      %v811 = vld [vmem:[#allocation2 + $0xa0] sm:$0xff]
      %v812 = vld [vmem:[#allocation2 + $0xa8] sm:$0xff]
      %v813 = vld [vmem:[#allocation2 + $0xb0] sm:$0xff]
      %v814 = vld [vmem:[#allocation2 + $0xb8] sm:$0xff]
      %v815 = vld [vmem:[#allocation2 + $0xc0] sm:$0xff]
      %v816 = vld [vmem:[#allocation2 + $0xc8] sm:$0xff]
      %v817 = vld [vmem:[#allocation2 + $0xd0] sm:$0xff]
      %v818 = vld [vmem:[#allocation2 + $0xd8] sm:$0xff]
      %v819 = vld [vmem:[#allocation2 + $0xe0] sm:$0xff]
      %v820 = vld [vmem:[#allocation2 + $0xe8] sm:$0xff]
      %v821 = vld [vmem:[#allocation2 + $0xf0] sm:$0xff]
      %v822 = vld [vmem:[#allocation2 + $0xf8] sm:$0xff]
      %v823 = vld [vmem:[#allocation2 + $0x100] sm:$0xff]
      %v824 = vld [vmem:[#allocation2 + $0x108] sm:$0xff]
      %v825 = vld [vmem:[#allocation2 + $0x110] sm:$0xff]
      %v826 = vld [vmem:[#allocation2 + $0x118] sm:$0xff]
      %v827 = vld [vmem:[#allocation2 + $0x120] sm:$0xff]
      %v828 = vld [vmem:[#allocation2 + $0x128] sm:$0xff]
      %v829 = vld [vmem:[#allocation2 + $0x130] sm:$0xff]
      %v830 = vld [vmem:[#allocation2 + $0x138] sm:$0xff]
      %v831 = vld [vmem:[#allocation2 + $0x140] sm:$0xff]
      %v832 = vld [vmem:[#allocation2 + $0x148] sm:$0xff]
      %v833 = vld [vmem:[#allocation2 + $0x150] sm:$0xff]
      %v834 = vld [vmem:[#allocation2 + $0x158] sm:$0xff]
      %v835 = vld [vmem:[#allocation2 + $0x160] sm:$0xff]
      %v836 = vld [vmem:[#allocation2 + $0x168] sm:$0xff]
      %v837 = vld [vmem:[#allocation2 + $0x170] sm:$0xff]
      %v838 = vld [vmem:[#allocation2 + $0x178] sm:$0xff]
      %v839 = vld [vmem:[#allocation2 + $0x180] sm:$0xff]
      %v840 = vld [vmem:[#allocation2 + $0x188] sm:$0xff]
      %v841 = vld [vmem:[#allocation2 + $0x190] sm:$0xff]
      %v842 = vld [vmem:[#allocation2 + $0x198] sm:$0xff]
      %v843 = vld [vmem:[#allocation2 + $0x1a0] sm:$0xff]
      %v844 = vld [vmem:[#allocation2 + $0x1a8] sm:$0xff]
      %v845 = vld [vmem:[#allocation2 + $0x1b0] sm:$0xff]
      %v846 = vld [vmem:[#allocation2 + $0x1b8] sm:$0xff]
      %v847 = vld [vmem:[#allocation2 + $0x1c0] sm:$0xff]
      %v848 = vld [vmem:[#allocation2 + $0x1c8] sm:$0xff]
      %v849 = vld [vmem:[#allocation2 + $0x1d0] sm:$0xff]
      %v850 = vld [vmem:[#allocation2 + $0x1d8] sm:$0xff]
      %v851 = vld [vmem:[#allocation2 + $0x1e0] sm:$0xff]
      %v852 = vld [vmem:[#allocation2 + $0x1e8] sm:$0xff]
      %v853 = vld [vmem:[#allocation2 + $0x1f0] sm:$0xff]
      %v854 = vld [vmem:[#allocation2 + $0x1f8] sm:$0xff]
      %v855 = vld [vmem:[#allocation2 + $0x200] sm:$0xff]
      %v856 = vld [vmem:[#allocation2 + $0x208] sm:$0xff]
      %v857 = vld [vmem:[#allocation2 + $0x210] sm:$0xff]
      %v858 = vld [vmem:[#allocation2 + $0x218] sm:$0xff]
      %v859 = vld [vmem:[#allocation2 + $0x220] sm:$0xff]
      %v860 = vld [vmem:[#allocation2 + $0x228] sm:$0xff]
      %v861 = vld [vmem:[#allocation2 + $0x230] sm:$0xff]
      %v862 = vld [vmem:[#allocation2 + $0x238] sm:$0xff]
      %v863 = vld [vmem:[#allocation2 + $0x240] sm:$0xff]
      %v864 = vld [vmem:[#allocation2 + $0x248] sm:$0xff]
      %v865 = vld [vmem:[#allocation2 + $0x250] sm:$0xff]
      %v866 = vld [vmem:[#allocation2 + $0x258] sm:$0xff]
      %v867 = vld [vmem:[#allocation2 + $0x260] sm:$0xff]
      %v868 = vld [vmem:[#allocation2 + $0x268] sm:$0xff]
      %v869 = vld [vmem:[#allocation2 + $0x270] sm:$0xff]
      %v870 = vld [vmem:[#allocation2 + $0x278] sm:$0xff]
      %vm871 = vcmask 261120
      %v873 = vsel %vm871, %v752, 0
      %v876 = vsel %vm871, %v754, 0
      %v879 = vsel %vm871, %v756, 0
      %v882 = vsel %vm871, %v758, 0
      %v885 = vsel %vm871, %v760, 0
      %v888 = vsel %vm871, %v762, 0
      %v891 = vsel %vm871, %v764, 0
      %v894 = vsel %vm871, %v766, 0
      %v897 = vsel %vm871, %v768, 0
      %v900 = vsel %vm871, %v770, 0
      %v903 = vsel %vm871, %v772, 0
      %v906 = vsel %vm871, %v774, 0
      %v909 = vsel %vm871, %v776, 0
      %v912 = vsel %vm871, %v778, 0
      %v915 = vsel %vm871, %v780, 0
      %v918 = vsel %vm871, %v782, 0
      %v921 = vsel %vm871, %v784, 0
      %v924 = vsel %vm871, %v786, 0
      %v927 = vsel %vm871, %v788, 0
      %v930 = vsel %vm871, %v790, 0
      %932 = vmatpush.msra.mxu0 %v851
      %933 = vmatpush.msra.mxu0 %v847
      %934 = vmatpush.msra.mxu0 %v843
      %935 = vmatpush.msra.mxu0 %v839
      %936 = vmatpush.msra.mxu0 %v835
      %937 = vmatpush.msra.mxu0 %v831
      %938 = vmatpush.msra.mxu0 %v827
      %939 = vmatpush.msra.mxu0 %v823
      %940 = vmatpush.msra.mxu0 %v819
      %941 = vmatpush.msra.mxu0 %v815
      %942 = vmatpush.msra.mxu0 %v811
      %943 = vmatpush.msra.mxu0 %v807
      %944 = vmatpush.msra.mxu0 %v803
      %945 = vmatpush.msra.mxu0 %v799
      %946 = vmatpush.msra.mxu0 %v795
      %947 = vmatpush.msra.mxu0 %v791
      %948 = vmatmul.f32.gmra.mxu0 %v751
      %v949 = vpop.f32.mrf.mxu0
      %v950 = vadd.f32 0.0, %v949
      %951 = vmatmul.f32.gmra.mxu0 %v753
      %v952 = vpop.f32.mrf.mxu0
      %v953 = vadd.f32 0.0, %v952
      %954 = vmatmul.f32.gmra.mxu0 %v755
      %v955 = vpop.f32.mrf.mxu0
      %v956 = vadd.f32 0.0, %v955
      %957 = vmatmul.f32.gmra.mxu0 %v757
      %v958 = vpop.f32.mrf.mxu0
      %v959 = vadd.f32 0.0, %v958
      %960 = vmatmul.f32.gmra.mxu0 %v759
      %v961 = vpop.f32.mrf.mxu0
      %v962 = vadd.f32 0.0, %v961
      %963 = vmatmul.f32.gmra.mxu0 %v761
      %v964 = vpop.f32.mrf.mxu0
      %v965 = vadd.f32 0.0, %v964
      %966 = vmatmul.f32.gmra.mxu0 %v763
      %v967 = vpop.f32.mrf.mxu0
      %v968 = vadd.f32 0.0, %v967
      %969 = vmatmul.f32.gmra.mxu0 %v765
      %v970 = vpop.f32.mrf.mxu0
      %v971 = vadd.f32 0.0, %v970
      %972 = vmatmul.f32.gmra.mxu0 %v767
      %v973 = vpop.f32.mrf.mxu0
      %v974 = vadd.f32 0.0, %v973
      %975 = vmatmul.f32.gmra.mxu0 %v769
      %v976 = vpop.f32.mrf.mxu0
      %v977 = vadd.f32 0.0, %v976
      %978 = vmatmul.f32.gmra.mxu0 %v771
      %v979 = vpop.f32.mrf.mxu0
      %v980 = vadd.f32 0.0, %v979
      %981 = vmatmul.f32.gmra.mxu0 %v773
      %v982 = vpop.f32.mrf.mxu0
      %v983 = vadd.f32 0.0, %v982
      %984 = vmatmul.f32.gmra.mxu0 %v775
      %v985 = vpop.f32.mrf.mxu0
      %v986 = vadd.f32 0.0, %v985
      %987 = vmatmul.f32.gmra.mxu0 %v777
      %v988 = vpop.f32.mrf.mxu0
      %v989 = vadd.f32 0.0, %v988
      %990 = vmatmul.f32.gmra.mxu0 %v779
      %v991 = vpop.f32.mrf.mxu0
      %v992 = vadd.f32 0.0, %v991
      %993 = vmatmul.f32.gmra.mxu0 %v781
      %v994 = vpop.f32.mrf.mxu0
      %v995 = vadd.f32 0.0, %v994
      %996 = vmatmul.f32.gmra.mxu0 %v783
      %v997 = vpop.f32.mrf.mxu0
      %v998 = vadd.f32 0.0, %v997
      %999 = vmatmul.f32.gmra.mxu0 %v785
      %v1000 = vpop.f32.mrf.mxu0
      %v1001 = vadd.f32 0.0, %v1000
      %1002 = vmatmul.f32.gmra.mxu0 %v787
      %v1003 = vpop.f32.mrf.mxu0
      %v1004 = vadd.f32 0.0, %v1003
      %1005 = vmatmul.f32.gmra.mxu0 %v789
      %v1006 = vpop.f32.mrf.mxu0
      %v1007 = vadd.f32 0.0, %v1006
      %1008 = vdwg.mxu0
      %1009 = vmatpush.msra.mxu0 0.0
      %1010 = vmatpush.msra.mxu0 0.0
      %1011 = vmatpush.msra.mxu0 0.0
      %1012 = vmatpush.msra.mxu0 0.0
      %1013 = vmatpush.msra.mxu0 0.0
      %1014 = vmatpush.msra.mxu0 0.0
      %1015 = vmatpush.msra.mxu0 0.0
      %1016 = vmatpush.msra.mxu0 0.0
      %1017 = vmatpush.msra.mxu0 0.0
      %1018 = vmatpush.msra.mxu0 0.0
      %1019 = vmatpush.msra.mxu0 0.0
      %1020 = vmatpush.msra.mxu0 0.0
      %1021 = vmatpush.msra.mxu0 %v867
      %1022 = vmatpush.msra.mxu0 %v863
      %1023 = vmatpush.msra.mxu0 %v859
      %1024 = vmatpush.msra.mxu0 %v855
      %1025 = vmatmul.f32.gmra.mxu0 %v873
      %v1026 = vpop.f32.mrf.mxu0
      %v1027 = vadd.f32 %v950, %v1026
      %1028 = vmatmul.f32.gmra.mxu0 %v876
      %v1029 = vpop.f32.mrf.mxu0
      %v1030 = vadd.f32 %v953, %v1029
      %1031 = vmatmul.f32.gmra.mxu0 %v879
      %v1032 = vpop.f32.mrf.mxu0
      %v1033 = vadd.f32 %v956, %v1032
      %1034 = vmatmul.f32.gmra.mxu0 %v882
      %v1035 = vpop.f32.mrf.mxu0
      %v1036 = vadd.f32 %v959, %v1035
      %1037 = vmatmul.f32.gmra.mxu0 %v885
      %v1038 = vpop.f32.mrf.mxu0
      %v1039 = vadd.f32 %v962, %v1038
      %1040 = vmatmul.f32.gmra.mxu0 %v888
      %v1041 = vpop.f32.mrf.mxu0
      %v1042 = vadd.f32 %v965, %v1041
      %1043 = vmatmul.f32.gmra.mxu0 %v891
      %v1044 = vpop.f32.mrf.mxu0
      %v1045 = vadd.f32 %v968, %v1044
      %1046 = vmatmul.f32.gmra.mxu0 %v894
      %v1047 = vpop.f32.mrf.mxu0
      %v1048 = vadd.f32 %v971, %v1047
      %1049 = vmatmul.f32.gmra.mxu0 %v897
      %v1050 = vpop.f32.mrf.mxu0
      %v1051 = vadd.f32 %v974, %v1050
      %1052 = vmatmul.f32.gmra.mxu0 %v900
      %v1053 = vpop.f32.mrf.mxu0
      %v1054 = vadd.f32 %v977, %v1053
      %1055 = vmatmul.f32.gmra.mxu0 %v903
      %v1056 = vpop.f32.mrf.mxu0
      %v1057 = vadd.f32 %v980, %v1056
      %1058 = vmatmul.f32.gmra.mxu0 %v906
      %v1059 = vpop.f32.mrf.mxu0
      %v1060 = vadd.f32 %v983, %v1059
      %1061 = vmatmul.f32.gmra.mxu0 %v909
      %v1062 = vpop.f32.mrf.mxu0
      %v1063 = vadd.f32 %v986, %v1062
      %1064 = vmatmul.f32.gmra.mxu0 %v912
      %v1065 = vpop.f32.mrf.mxu0
      %v1066 = vadd.f32 %v989, %v1065
      %1067 = vmatmul.f32.gmra.mxu0 %v915
      %v1068 = vpop.f32.mrf.mxu0
      %v1069 = vadd.f32 %v992, %v1068
      %1070 = vmatmul.f32.gmra.mxu0 %v918
      %v1071 = vpop.f32.mrf.mxu0
      %v1072 = vadd.f32 %v995, %v1071
      %1073 = vmatmul.f32.gmra.mxu0 %v921
      %v1074 = vpop.f32.mrf.mxu0
      %v1075 = vadd.f32 %v998, %v1074
      %1076 = vmatmul.f32.gmra.mxu0 %v924
      %v1077 = vpop.f32.mrf.mxu0
      %v1078 = vadd.f32 %v1001, %v1077
      %1079 = vmatmul.f32.gmra.mxu0 %v927
      %v1080 = vpop.f32.mrf.mxu0
      %v1081 = vadd.f32 %v1004, %v1080
      %1082 = vmatmul.f32.gmra.mxu0 %v930
      %v1083 = vpop.f32.mrf.mxu0
      %v1084 = vadd.f32 %v1007, %v1083
      %1085 = vdwg.mxu0
      %1086 = vmatpush.msra.mxu0 %v852
      %1087 = vmatpush.msra.mxu0 %v848
      %1088 = vmatpush.msra.mxu0 %v844
      %1089 = vmatpush.msra.mxu0 %v840
      %1090 = vmatpush.msra.mxu0 %v836
      %1091 = vmatpush.msra.mxu0 %v832
      %1092 = vmatpush.msra.mxu0 %v828
      %1093 = vmatpush.msra.mxu0 %v824
      %1094 = vmatpush.msra.mxu0 %v820
      %1095 = vmatpush.msra.mxu0 %v816
      %1096 = vmatpush.msra.mxu0 %v812
      %1097 = vmatpush.msra.mxu0 %v808
      %1098 = vmatpush.msra.mxu0 %v804
      %1099 = vmatpush.msra.mxu0 %v800
      %1100 = vmatpush.msra.mxu0 %v796
      %1101 = vmatpush.msra.mxu0 %v792
      %1102 = vmatmul.f32.gmra.mxu0 %v751
      %v1103 = vpop.f32.mrf.mxu0
      %v1104 = vadd.f32 0.0, %v1103
      %1105 = vmatmul.f32.gmra.mxu0 %v753
      %v1106 = vpop.f32.mrf.mxu0
      %v1107 = vadd.f32 0.0, %v1106
      %1108 = vmatmul.f32.gmra.mxu0 %v755
      %v1109 = vpop.f32.mrf.mxu0
      %v1110 = vadd.f32 0.0, %v1109
      %1111 = vmatmul.f32.gmra.mxu0 %v757
      %v1112 = vpop.f32.mrf.mxu0
      %v1113 = vadd.f32 0.0, %v1112
      %1114 = vmatmul.f32.gmra.mxu0 %v759
      %v1115 = vpop.f32.mrf.mxu0
      %v1116 = vadd.f32 0.0, %v1115
      %1117 = vmatmul.f32.gmra.mxu0 %v761
      %v1118 = vpop.f32.mrf.mxu0
      %v1119 = vadd.f32 0.0, %v1118
      %1120 = vmatmul.f32.gmra.mxu0 %v763
      %v1121 = vpop.f32.mrf.mxu0
      %v1122 = vadd.f32 0.0, %v1121
      %1123 = vmatmul.f32.gmra.mxu0 %v765
      %v1124 = vpop.f32.mrf.mxu0
      %v1125 = vadd.f32 0.0, %v1124
      %1126 = vmatmul.f32.gmra.mxu0 %v767
      %v1127 = vpop.f32.mrf.mxu0
      %v1128 = vadd.f32 0.0, %v1127
      %1129 = vmatmul.f32.gmra.mxu0 %v769
      %v1130 = vpop.f32.mrf.mxu0
      %v1131 = vadd.f32 0.0, %v1130
      %1132 = vmatmul.f32.gmra.mxu0 %v771
      %v1133 = vpop.f32.mrf.mxu0
      %v1134 = vadd.f32 0.0, %v1133
      %1135 = vmatmul.f32.gmra.mxu0 %v773
      %v1136 = vpop.f32.mrf.mxu0
      %v1137 = vadd.f32 0.0, %v1136
      %1138 = vmatmul.f32.gmra.mxu0 %v775
      %v1139 = vpop.f32.mrf.mxu0
      %v1140 = vadd.f32 0.0, %v1139
      %1141 = vmatmul.f32.gmra.mxu0 %v777
      %v1142 = vpop.f32.mrf.mxu0
      %v1143 = vadd.f32 0.0, %v1142
      %1144 = vmatmul.f32.gmra.mxu0 %v779
      %v1145 = vpop.f32.mrf.mxu0
      %v1146 = vadd.f32 0.0, %v1145
      %1147 = vmatmul.f32.gmra.mxu0 %v781
      %v1148 = vpop.f32.mrf.mxu0
      %v1149 = vadd.f32 0.0, %v1148
      %1150 = vmatmul.f32.gmra.mxu0 %v783
      %v1151 = vpop.f32.mrf.mxu0
      %v1152 = vadd.f32 0.0, %v1151
      %1153 = vmatmul.f32.gmra.mxu0 %v785
      %v1154 = vpop.f32.mrf.mxu0
      %v1155 = vadd.f32 0.0, %v1154
      %1156 = vmatmul.f32.gmra.mxu0 %v787
      %v1157 = vpop.f32.mrf.mxu0
      %v1158 = vadd.f32 0.0, %v1157
      %1159 = vmatmul.f32.gmra.mxu0 %v789
      %v1160 = vpop.f32.mrf.mxu0
      %v1161 = vadd.f32 0.0, %v1160
      %1162 = vdwg.mxu0
      %1163 = vmatpush.msra.mxu0 0.0
      %1164 = vmatpush.msra.mxu0 0.0
      %1165 = vmatpush.msra.mxu0 0.0
      %1166 = vmatpush.msra.mxu0 0.0
      %1167 = vmatpush.msra.mxu0 0.0
      %1168 = vmatpush.msra.mxu0 0.0
      %1169 = vmatpush.msra.mxu0 0.0
      %1170 = vmatpush.msra.mxu0 0.0
      %1171 = vmatpush.msra.mxu0 0.0
      %1172 = vmatpush.msra.mxu0 0.0
      %1173 = vmatpush.msra.mxu0 0.0
      %1174 = vmatpush.msra.mxu0 0.0
      %1175 = vmatpush.msra.mxu0 %v868
      %1176 = vmatpush.msra.mxu0 %v864
      %1177 = vmatpush.msra.mxu0 %v860
      %1178 = vmatpush.msra.mxu0 %v856
      %1179 = vmatmul.f32.gmra.mxu0 %v873
      %v1180 = vpop.f32.mrf.mxu0
      %v1181 = vadd.f32 %v1104, %v1180
      %1182 = vmatmul.f32.gmra.mxu0 %v876
      %v1183 = vpop.f32.mrf.mxu0
      %v1184 = vadd.f32 %v1107, %v1183
      %1185 = vmatmul.f32.gmra.mxu0 %v879
      %v1186 = vpop.f32.mrf.mxu0
      %v1187 = vadd.f32 %v1110, %v1186
      %1188 = vmatmul.f32.gmra.mxu0 %v882
      %v1189 = vpop.f32.mrf.mxu0
      %v1190 = vadd.f32 %v1113, %v1189
      %1191 = vmatmul.f32.gmra.mxu0 %v885
      %v1192 = vpop.f32.mrf.mxu0
      %v1193 = vadd.f32 %v1116, %v1192
      %1194 = vmatmul.f32.gmra.mxu0 %v888
      %v1195 = vpop.f32.mrf.mxu0
      %v1196 = vadd.f32 %v1119, %v1195
      %1197 = vmatmul.f32.gmra.mxu0 %v891
      %v1198 = vpop.f32.mrf.mxu0
      %v1199 = vadd.f32 %v1122, %v1198
      %1200 = vmatmul.f32.gmra.mxu0 %v894
      %v1201 = vpop.f32.mrf.mxu0
      %v1202 = vadd.f32 %v1125, %v1201
      %1203 = vmatmul.f32.gmra.mxu0 %v897
      %v1204 = vpop.f32.mrf.mxu0
      %v1205 = vadd.f32 %v1128, %v1204
      %1206 = vmatmul.f32.gmra.mxu0 %v900
      %v1207 = vpop.f32.mrf.mxu0
      %v1208 = vadd.f32 %v1131, %v1207
      %1209 = vmatmul.f32.gmra.mxu0 %v903
      %v1210 = vpop.f32.mrf.mxu0
      %v1211 = vadd.f32 %v1134, %v1210
      %1212 = vmatmul.f32.gmra.mxu0 %v906
      %v1213 = vpop.f32.mrf.mxu0
      %v1214 = vadd.f32 %v1137, %v1213
      %1215 = vmatmul.f32.gmra.mxu0 %v909
      %v1216 = vpop.f32.mrf.mxu0
      %v1217 = vadd.f32 %v1140, %v1216
      %1218 = vmatmul.f32.gmra.mxu0 %v912
      %v1219 = vpop.f32.mrf.mxu0
      %v1220 = vadd.f32 %v1143, %v1219
      %1221 = vmatmul.f32.gmra.mxu0 %v915
      %v1222 = vpop.f32.mrf.mxu0
      %v1223 = vadd.f32 %v1146, %v1222
      %1224 = vmatmul.f32.gmra.mxu0 %v918
      %v1225 = vpop.f32.mrf.mxu0
      %v1226 = vadd.f32 %v1149, %v1225
      %1227 = vmatmul.f32.gmra.mxu0 %v921
      %v1228 = vpop.f32.mrf.mxu0
      %v1229 = vadd.f32 %v1152, %v1228
      %1230 = vmatmul.f32.gmra.mxu0 %v924
      %v1231 = vpop.f32.mrf.mxu0
      %v1232 = vadd.f32 %v1155, %v1231
      %1233 = vmatmul.f32.gmra.mxu0 %v927
      %v1234 = vpop.f32.mrf.mxu0
      %v1235 = vadd.f32 %v1158, %v1234
      %1236 = vmatmul.f32.gmra.mxu0 %v930
      %v1237 = vpop.f32.mrf.mxu0
      %v1238 = vadd.f32 %v1161, %v1237
      %1239 = vdwg.mxu0
      %1240 = vmatpush.msra.mxu0 %v853
      %1241 = vmatpush.msra.mxu0 %v849
      %1242 = vmatpush.msra.mxu0 %v845
      %1243 = vmatpush.msra.mxu0 %v841
      %1244 = vmatpush.msra.mxu0 %v837
      %1245 = vmatpush.msra.mxu0 %v833
      %1246 = vmatpush.msra.mxu0 %v829
      %1247 = vmatpush.msra.mxu0 %v825
      %1248 = vmatpush.msra.mxu0 %v821
      %1249 = vmatpush.msra.mxu0 %v817
      %1250 = vmatpush.msra.mxu0 %v813
      %1251 = vmatpush.msra.mxu0 %v809
      %1252 = vmatpush.msra.mxu0 %v805
      %1253 = vmatpush.msra.mxu0 %v801
      %1254 = vmatpush.msra.mxu0 %v797
      %1255 = vmatpush.msra.mxu0 %v793
      %1256 = vmatmul.f32.gmra.mxu0 %v751
      %v1257 = vpop.f32.mrf.mxu0
      %v1258 = vadd.f32 0.0, %v1257
      %1259 = vmatmul.f32.gmra.mxu0 %v753
      %v1260 = vpop.f32.mrf.mxu0
      %v1261 = vadd.f32 0.0, %v1260
      %1262 = vmatmul.f32.gmra.mxu0 %v755
      %v1263 = vpop.f32.mrf.mxu0
      %v1264 = vadd.f32 0.0, %v1263
      %1265 = vmatmul.f32.gmra.mxu0 %v757
      %v1266 = vpop.f32.mrf.mxu0
      %v1267 = vadd.f32 0.0, %v1266
      %1268 = vmatmul.f32.gmra.mxu0 %v759
      %v1269 = vpop.f32.mrf.mxu0
      %v1270 = vadd.f32 0.0, %v1269
      %1271 = vmatmul.f32.gmra.mxu0 %v761
      %v1272 = vpop.f32.mrf.mxu0
      %v1273 = vadd.f32 0.0, %v1272
      %1274 = vmatmul.f32.gmra.mxu0 %v763
      %v1275 = vpop.f32.mrf.mxu0
      %v1276 = vadd.f32 0.0, %v1275
      %1277 = vmatmul.f32.gmra.mxu0 %v765
      %v1278 = vpop.f32.mrf.mxu0
      %v1279 = vadd.f32 0.0, %v1278
      %1280 = vmatmul.f32.gmra.mxu0 %v767
      %v1281 = vpop.f32.mrf.mxu0
      %v1282 = vadd.f32 0.0, %v1281
      %1283 = vmatmul.f32.gmra.mxu0 %v769
      %v1284 = vpop.f32.mrf.mxu0
      %v1285 = vadd.f32 0.0, %v1284
      %1286 = vmatmul.f32.gmra.mxu0 %v771
      %v1287 = vpop.f32.mrf.mxu0
      %v1288 = vadd.f32 0.0, %v1287
      %1289 = vmatmul.f32.gmra.mxu0 %v773
      %v1290 = vpop.f32.mrf.mxu0
      %v1291 = vadd.f32 0.0, %v1290
      %1292 = vmatmul.f32.gmra.mxu0 %v775
      %v1293 = vpop.f32.mrf.mxu0
      %v1294 = vadd.f32 0.0, %v1293
      %1295 = vmatmul.f32.gmra.mxu0 %v777
      %v1296 = vpop.f32.mrf.mxu0
      %v1297 = vadd.f32 0.0, %v1296
      %1298 = vmatmul.f32.gmra.mxu0 %v779
      %v1299 = vpop.f32.mrf.mxu0
      %v1300 = vadd.f32 0.0, %v1299
      %1301 = vmatmul.f32.gmra.mxu0 %v781
      %v1302 = vpop.f32.mrf.mxu0
      %v1303 = vadd.f32 0.0, %v1302
      %1304 = vmatmul.f32.gmra.mxu0 %v783
      %v1305 = vpop.f32.mrf.mxu0
      %v1306 = vadd.f32 0.0, %v1305
      %1307 = vmatmul.f32.gmra.mxu0 %v785
      %v1308 = vpop.f32.mrf.mxu0
      %v1309 = vadd.f32 0.0, %v1308
      %1310 = vmatmul.f32.gmra.mxu0 %v787
      %v1311 = vpop.f32.mrf.mxu0
      %v1312 = vadd.f32 0.0, %v1311
      %1313 = vmatmul.f32.gmra.mxu0 %v789
      %v1314 = vpop.f32.mrf.mxu0
      %v1315 = vadd.f32 0.0, %v1314
      %1316 = vdwg.mxu0
      %1317 = vmatpush.msra.mxu0 0.0
      %1318 = vmatpush.msra.mxu0 0.0
      %1319 = vmatpush.msra.mxu0 0.0
      %1320 = vmatpush.msra.mxu0 0.0
      %1321 = vmatpush.msra.mxu0 0.0
      %1322 = vmatpush.msra.mxu0 0.0
      %1323 = vmatpush.msra.mxu0 0.0
      %1324 = vmatpush.msra.mxu0 0.0
      %1325 = vmatpush.msra.mxu0 0.0
      %1326 = vmatpush.msra.mxu0 0.0
      %1327 = vmatpush.msra.mxu0 0.0
      %1328 = vmatpush.msra.mxu0 0.0
      %1329 = vmatpush.msra.mxu0 %v869
      %1330 = vmatpush.msra.mxu0 %v865
      %1331 = vmatpush.msra.mxu0 %v861
      %1332 = vmatpush.msra.mxu0 %v857
      %1333 = vmatmul.f32.gmra.mxu0 %v873
      %v1334 = vpop.f32.mrf.mxu0
      %v1335 = vadd.f32 %v1258, %v1334
      %1336 = vmatmul.f32.gmra.mxu0 %v876
      %v1337 = vpop.f32.mrf.mxu0
      %v1338 = vadd.f32 %v1261, %v1337
      %1339 = vmatmul.f32.gmra.mxu0 %v879
      %v1340 = vpop.f32.mrf.mxu0
      %v1341 = vadd.f32 %v1264, %v1340
      %1342 = vmatmul.f32.gmra.mxu0 %v882
      %v1343 = vpop.f32.mrf.mxu0
      %v1344 = vadd.f32 %v1267, %v1343
      %1345 = vmatmul.f32.gmra.mxu0 %v885
      %v1346 = vpop.f32.mrf.mxu0
      %v1347 = vadd.f32 %v1270, %v1346
      %1348 = vmatmul.f32.gmra.mxu0 %v888
      %v1349 = vpop.f32.mrf.mxu0
      %v1350 = vadd.f32 %v1273, %v1349
      %1351 = vmatmul.f32.gmra.mxu0 %v891
      %v1352 = vpop.f32.mrf.mxu0
      %v1353 = vadd.f32 %v1276, %v1352
      %1354 = vmatmul.f32.gmra.mxu0 %v894
      %v1355 = vpop.f32.mrf.mxu0
      %v1356 = vadd.f32 %v1279, %v1355
      %1357 = vmatmul.f32.gmra.mxu0 %v897
      %v1358 = vpop.f32.mrf.mxu0
      %v1359 = vadd.f32 %v1282, %v1358
      %1360 = vmatmul.f32.gmra.mxu0 %v900
      %v1361 = vpop.f32.mrf.mxu0
      %v1362 = vadd.f32 %v1285, %v1361
      %1363 = vmatmul.f32.gmra.mxu0 %v903
      %v1364 = vpop.f32.mrf.mxu0
      %v1365 = vadd.f32 %v1288, %v1364
      %1366 = vmatmul.f32.gmra.mxu0 %v906
      %v1367 = vpop.f32.mrf.mxu0
      %v1368 = vadd.f32 %v1291, %v1367
      %1369 = vmatmul.f32.gmra.mxu0 %v909
      %v1370 = vpop.f32.mrf.mxu0
      %v1371 = vadd.f32 %v1294, %v1370
      %1372 = vmatmul.f32.gmra.mxu0 %v912
      %v1373 = vpop.f32.mrf.mxu0
      %v1374 = vadd.f32 %v1297, %v1373
      %1375 = vmatmul.f32.gmra.mxu0 %v915
      %v1376 = vpop.f32.mrf.mxu0
      %v1377 = vadd.f32 %v1300, %v1376
      %1378 = vmatmul.f32.gmra.mxu0 %v918
      %v1379 = vpop.f32.mrf.mxu0
      %v1380 = vadd.f32 %v1303, %v1379
      %1381 = vmatmul.f32.gmra.mxu0 %v921
      %v1382 = vpop.f32.mrf.mxu0
      %v1383 = vadd.f32 %v1306, %v1382
      %1384 = vmatmul.f32.gmra.mxu0 %v924
      %v1385 = vpop.f32.mrf.mxu0
      %v1386 = vadd.f32 %v1309, %v1385
      %1387 = vmatmul.f32.gmra.mxu0 %v927
      %v1388 = vpop.f32.mrf.mxu0
      %v1389 = vadd.f32 %v1312, %v1388
      %1390 = vmatmul.f32.gmra.mxu0 %v930
      %v1391 = vpop.f32.mrf.mxu0
      %v1392 = vadd.f32 %v1315, %v1391
      %1393 = vdwg.mxu0
      %1394 = vmatpush.msra.mxu0 %v854
      %1395 = vmatpush.msra.mxu0 %v850
      %1396 = vmatpush.msra.mxu0 %v846
      %1397 = vmatpush.msra.mxu0 %v842
      %1398 = vmatpush.msra.mxu0 %v838
      %1399 = vmatpush.msra.mxu0 %v834
      %1400 = vmatpush.msra.mxu0 %v830
      %1401 = vmatpush.msra.mxu0 %v826
      %1402 = vmatpush.msra.mxu0 %v822
      %1403 = vmatpush.msra.mxu0 %v818
      %1404 = vmatpush.msra.mxu0 %v814
      %1405 = vmatpush.msra.mxu0 %v810
      %1406 = vmatpush.msra.mxu0 %v806
      %1407 = vmatpush.msra.mxu0 %v802
      %1408 = vmatpush.msra.mxu0 %v798
      %1409 = vmatpush.msra.mxu0 %v794
      %1410 = vmatmul.f32.gmra.mxu0 %v751
      %v1411 = vpop.f32.mrf.mxu0
      %v1412 = vadd.f32 0.0, %v1411
      %1413 = vmatmul.f32.gmra.mxu0 %v753
      %v1414 = vpop.f32.mrf.mxu0
      %v1415 = vadd.f32 0.0, %v1414
      %1416 = vmatmul.f32.gmra.mxu0 %v755
      %v1417 = vpop.f32.mrf.mxu0
      %v1418 = vadd.f32 0.0, %v1417
      %1419 = vmatmul.f32.gmra.mxu0 %v757
      %v1420 = vpop.f32.mrf.mxu0
      %v1421 = vadd.f32 0.0, %v1420
      %1422 = vmatmul.f32.gmra.mxu0 %v759
      %v1423 = vpop.f32.mrf.mxu0
      %v1424 = vadd.f32 0.0, %v1423
      %1425 = vmatmul.f32.gmra.mxu0 %v761
      %v1426 = vpop.f32.mrf.mxu0
      %v1427 = vadd.f32 0.0, %v1426
      %1428 = vmatmul.f32.gmra.mxu0 %v763
      %v1429 = vpop.f32.mrf.mxu0
      %v1430 = vadd.f32 0.0, %v1429
      %1431 = vmatmul.f32.gmra.mxu0 %v765
      %v1432 = vpop.f32.mrf.mxu0
      %v1433 = vadd.f32 0.0, %v1432
      %1434 = vmatmul.f32.gmra.mxu0 %v767
      %v1435 = vpop.f32.mrf.mxu0
      %v1436 = vadd.f32 0.0, %v1435
      %1437 = vmatmul.f32.gmra.mxu0 %v769
      %v1438 = vpop.f32.mrf.mxu0
      %v1439 = vadd.f32 0.0, %v1438
      %1440 = vmatmul.f32.gmra.mxu0 %v771
      %v1441 = vpop.f32.mrf.mxu0
      %v1442 = vadd.f32 0.0, %v1441
      %1443 = vmatmul.f32.gmra.mxu0 %v773
      %v1444 = vpop.f32.mrf.mxu0
      %v1445 = vadd.f32 0.0, %v1444
      %1446 = vmatmul.f32.gmra.mxu0 %v775
      %v1447 = vpop.f32.mrf.mxu0
      %v1448 = vadd.f32 0.0, %v1447
      %1449 = vmatmul.f32.gmra.mxu0 %v777
      %v1450 = vpop.f32.mrf.mxu0
      %v1451 = vadd.f32 0.0, %v1450
      %1452 = vmatmul.f32.gmra.mxu0 %v779
      %v1453 = vpop.f32.mrf.mxu0
      %v1454 = vadd.f32 0.0, %v1453
      %1455 = vmatmul.f32.gmra.mxu0 %v781
      %v1456 = vpop.f32.mrf.mxu0
      %v1457 = vadd.f32 0.0, %v1456
      %1458 = vmatmul.f32.gmra.mxu0 %v783
      %v1459 = vpop.f32.mrf.mxu0
      %v1460 = vadd.f32 0.0, %v1459
      %1461 = vmatmul.f32.gmra.mxu0 %v785
      %v1462 = vpop.f32.mrf.mxu0
      %v1463 = vadd.f32 0.0, %v1462
      %1464 = vmatmul.f32.gmra.mxu0 %v787
      %v1465 = vpop.f32.mrf.mxu0
      %v1466 = vadd.f32 0.0, %v1465
      %1467 = vmatmul.f32.gmra.mxu0 %v789
      %v1468 = vpop.f32.mrf.mxu0
      %v1469 = vadd.f32 0.0, %v1468
      %1470 = vdwg.mxu0
      %1471 = vmatpush.msra.mxu0 0.0
      %1472 = vmatpush.msra.mxu0 0.0
      %1473 = vmatpush.msra.mxu0 0.0
      %1474 = vmatpush.msra.mxu0 0.0
      %1475 = vmatpush.msra.mxu0 0.0
      %1476 = vmatpush.msra.mxu0 0.0
      %1477 = vmatpush.msra.mxu0 0.0
      %1478 = vmatpush.msra.mxu0 0.0
      %1479 = vmatpush.msra.mxu0 0.0
      %1480 = vmatpush.msra.mxu0 0.0
      %1481 = vmatpush.msra.mxu0 0.0
      %1482 = vmatpush.msra.mxu0 0.0
      %1483 = vmatpush.msra.mxu0 %v870
      %1484 = vmatpush.msra.mxu0 %v866
      %1485 = vmatpush.msra.mxu0 %v862
      %1486 = vmatpush.msra.mxu0 %v858
      %1487 = vmatmul.f32.gmra.mxu0 %v873
      %v1488 = vpop.f32.mrf.mxu0
      %v1489 = vadd.f32 %v1412, %v1488
      %1490 = vmatmul.f32.gmra.mxu0 %v876
      %v1491 = vpop.f32.mrf.mxu0
      %v1492 = vadd.f32 %v1415, %v1491
      %1493 = vmatmul.f32.gmra.mxu0 %v879
      %v1494 = vpop.f32.mrf.mxu0
      %v1495 = vadd.f32 %v1418, %v1494
      %1496 = vmatmul.f32.gmra.mxu0 %v882
      %v1497 = vpop.f32.mrf.mxu0
      %v1498 = vadd.f32 %v1421, %v1497
      %1499 = vmatmul.f32.gmra.mxu0 %v885
      %v1500 = vpop.f32.mrf.mxu0
      %v1501 = vadd.f32 %v1424, %v1500
      %1502 = vmatmul.f32.gmra.mxu0 %v888
      %v1503 = vpop.f32.mrf.mxu0
      %v1504 = vadd.f32 %v1427, %v1503
      %1505 = vmatmul.f32.gmra.mxu0 %v891
      %v1506 = vpop.f32.mrf.mxu0
      %v1507 = vadd.f32 %v1430, %v1506
      %1508 = vmatmul.f32.gmra.mxu0 %v894
      %v1509 = vpop.f32.mrf.mxu0
      %v1510 = vadd.f32 %v1433, %v1509
      %1511 = vmatmul.f32.gmra.mxu0 %v897
      %v1512 = vpop.f32.mrf.mxu0
      %v1513 = vadd.f32 %v1436, %v1512
      %1514 = vmatmul.f32.gmra.mxu0 %v900
      %v1515 = vpop.f32.mrf.mxu0
      %v1516 = vadd.f32 %v1439, %v1515
      %1517 = vmatmul.f32.gmra.mxu0 %v903
      %v1518 = vpop.f32.mrf.mxu0
      %v1519 = vadd.f32 %v1442, %v1518
      %1520 = vmatmul.f32.gmra.mxu0 %v906
      %v1521 = vpop.f32.mrf.mxu0
      %v1522 = vadd.f32 %v1445, %v1521
      %1523 = vmatmul.f32.gmra.mxu0 %v909
      %v1524 = vpop.f32.mrf.mxu0
      %v1525 = vadd.f32 %v1448, %v1524
      %1526 = vmatmul.f32.gmra.mxu0 %v912
      %v1527 = vpop.f32.mrf.mxu0
      %v1528 = vadd.f32 %v1451, %v1527
      %1529 = vmatmul.f32.gmra.mxu0 %v915
      %v1530 = vpop.f32.mrf.mxu0
      %v1531 = vadd.f32 %v1454, %v1530
      %1532 = vmatmul.f32.gmra.mxu0 %v918
      %v1533 = vpop.f32.mrf.mxu0
      %v1534 = vadd.f32 %v1457, %v1533
      %1535 = vmatmul.f32.gmra.mxu0 %v921
      %v1536 = vpop.f32.mrf.mxu0
      %v1537 = vadd.f32 %v1460, %v1536
      %1538 = vmatmul.f32.gmra.mxu0 %v924
      %v1539 = vpop.f32.mrf.mxu0
      %v1540 = vadd.f32 %v1463, %v1539
      %1541 = vmatmul.f32.gmra.mxu0 %v927
      %v1542 = vpop.f32.mrf.mxu0
      %v1543 = vadd.f32 %v1466, %v1542
      %1544 = vmatmul.f32.gmra.mxu0 %v930
      %v1545 = vpop.f32.mrf.mxu0
      %v1546 = vadd.f32 %v1469, %v1545
      %1547 = vdwg.mxu0
      %v1548 = vld [vmem:[%s4] sm:$0xff]
      %v1549 = vld [vmem:[%s4 + $0x8] sm:$0xff]
      %v1550 = vld [vmem:[%s4 + $0x10] sm:$0xff]
      %v1551 = vld [vmem:[%s4 + $0x18] sm:$0xff]
      %1553 = vset.pattern.permute.xlu0 0
      %1554 = vperm.xlu0 %1553, %v1548
      %v1555 = vpop.permute.xlu0 %1554
      %1558 = vset.pattern.permute.xlu0 0
      %1559 = vperm.xlu0 %1558, %v1549
      %v1560 = vpop.permute.xlu0 %1559
      %1563 = vset.pattern.permute.xlu0 0
      %1564 = vperm.xlu0 %1563, %v1550
      %v1565 = vpop.permute.xlu0 %1564
      %1568 = vset.pattern.permute.xlu0 0
      %1569 = vperm.xlu0 %1568, %v1551
      %v1570 = vpop.permute.xlu0 %1569
      %v1572 = vadd.f32 %v1027, %v1555
      %v1573 = vadd.f32 %v1181, %v1555
      %v1574 = vadd.f32 %v1335, %v1555
      %v1575 = vadd.f32 %v1489, %v1555
      %v1576 = vadd.f32 %v1030, %v1560
      %v1577 = vadd.f32 %v1184, %v1560
      %v1578 = vadd.f32 %v1338, %v1560
      %v1579 = vadd.f32 %v1492, %v1560
      %v1580 = vadd.f32 %v1033, %v1565
      %v1581 = vadd.f32 %v1187, %v1565
      %v1582 = vadd.f32 %v1341, %v1565
      %v1583 = vadd.f32 %v1495, %v1565
      %v1584 = vadd.f32 %v1036, %v1570
      %v1585 = vadd.f32 %v1190, %v1570
      %v1586 = vadd.f32 %v1344, %v1570
      %v1587 = vadd.f32 %v1498, %v1570
      %v1588 = vtanh.pop %v1572
      %v1589 = vtanh.pop %v1573
      %v1590 = vtanh.pop %v1574
      %v1591 = vtanh.pop %v1575
      %v1592 = vtanh.pop %v1576
      %v1593 = vtanh.pop %v1577
      %v1594 = vtanh.pop %v1578
      %v1595 = vtanh.pop %v1579
      %v1596 = vtanh.pop %v1580
      %v1597 = vtanh.pop %v1581
      %v1598 = vtanh.pop %v1582
      %v1599 = vtanh.pop %v1583
      %v1600 = vtanh.pop %v1584
      %v1601 = vtanh.pop %v1585
      %v1602 = vtanh.pop %v1586
      %v1603 = vtanh.pop %v1587
      %v1604 = vmul.f32 %v1588, %v1588
      %v1605 = vmul.f32 %v1589, %v1589
      %v1606 = vmul.f32 %v1590, %v1590
      %v1607 = vmul.f32 %v1591, %v1591
      %v1608 = vmul.f32 %v1592, %v1592
      %v1609 = vmul.f32 %v1593, %v1593
      %v1610 = vmul.f32 %v1594, %v1594
      %v1611 = vmul.f32 %v1595, %v1595
      %v1612 = vmul.f32 %v1596, %v1596
      %v1613 = vmul.f32 %v1597, %v1597
      %v1614 = vmul.f32 %v1598, %v1598
      %v1615 = vmul.f32 %v1599, %v1599
      %v1616 = vmul.f32 %v1600, %v1600
      %v1617 = vmul.f32 %v1601, %v1601
      %v1618 = vmul.f32 %v1602, %v1602
      %v1619 = vmul.f32 %v1603, %v1603
      %v1620 = vsub.f32 1.0, %v1604
      %v1621 = vsub.f32 1.0, %v1605
      %v1622 = vsub.f32 1.0, %v1606
      %v1623 = vsub.f32 1.0, %v1607
      %v1624 = vsub.f32 1.0, %v1608
      %v1625 = vsub.f32 1.0, %v1609
      %v1626 = vsub.f32 1.0, %v1610
      %v1627 = vsub.f32 1.0, %v1611
      %v1628 = vsub.f32 1.0, %v1612
      %v1629 = vsub.f32 1.0, %v1613
      %v1630 = vsub.f32 1.0, %v1614
      %v1631 = vsub.f32 1.0, %v1615
      %v1632 = vsub.f32 1.0, %v1616
      %v1633 = vsub.f32 1.0, %v1617
      %v1634 = vsub.f32 1.0, %v1618
      %v1635 = vsub.f32 1.0, %v1619
      %v1636 = vmul.f32 %v1588, -2.0
      %v1637 = vmul.f32 %v1589, -2.0
      %v1638 = vmul.f32 %v1590, -2.0
      %v1639 = vmul.f32 %v1591, -2.0
      %v1640 = vmul.f32 %v1592, -2.0
      %v1641 = vmul.f32 %v1593, -2.0
      %v1642 = vmul.f32 %v1594, -2.0
      %v1643 = vmul.f32 %v1595, -2.0
      %v1644 = vmul.f32 %v1596, -2.0
      %v1645 = vmul.f32 %v1597, -2.0
      %v1646 = vmul.f32 %v1598, -2.0
      %v1647 = vmul.f32 %v1599, -2.0
      %v1648 = vmul.f32 %v1600, -2.0
      %v1649 = vmul.f32 %v1601, -2.0
      %v1650 = vmul.f32 %v1602, -2.0
      %v1651 = vmul.f32 %v1603, -2.0
      %v1652 = vmul.f32 %v1636, %v1620
      %v1653 = vmul.f32 %v1637, %v1621
      %v1654 = vmul.f32 %v1638, %v1622
      %v1655 = vmul.f32 %v1639, %v1623
      %v1656 = vmul.f32 %v1640, %v1624
      %v1657 = vmul.f32 %v1641, %v1625
      %v1658 = vmul.f32 %v1642, %v1626
      %v1659 = vmul.f32 %v1643, %v1627
      %v1660 = vmul.f32 %v1644, %v1628
      %v1661 = vmul.f32 %v1645, %v1629
      %v1662 = vmul.f32 %v1646, %v1630
      %v1663 = vmul.f32 %v1647, %v1631
      %v1664 = vmul.f32 %v1648, %v1632
      %v1665 = vmul.f32 %v1649, %v1633
      %v1666 = vmul.f32 %v1650, %v1634
      %v1667 = vmul.f32 %v1651, %v1635
      %1668 = vst [vmem:[#allocation3] sm:$0xff] %v1588
      %1669 = vst [vmem:[#allocation3 + $0x8] sm:$0xff] %v1589
      %1670 = vst [vmem:[#allocation3 + $0x10] sm:$0xff] %v1590
      %1671 = vst [vmem:[#allocation3 + $0x18] sm:$0xff] %v1591
      %1672 = vst [vmem:[#allocation3 + $0x20] sm:$0xff] %v1592
      %1673 = vst [vmem:[#allocation3 + $0x28] sm:$0xff] %v1593
      %1674 = vst [vmem:[#allocation3 + $0x30] sm:$0xff] %v1594
      %1675 = vst [vmem:[#allocation3 + $0x38] sm:$0xff] %v1595
      %1676 = vst [vmem:[#allocation3 + $0x40] sm:$0xff] %v1596
      %1677 = vst [vmem:[#allocation3 + $0x48] sm:$0xff] %v1597
      %1678 = vst [vmem:[#allocation3 + $0x50] sm:$0xff] %v1598
      %1679 = vst [vmem:[#allocation3 + $0x58] sm:$0xff] %v1599
      %1680 = vst [vmem:[#allocation3 + $0x60] sm:$0xff] %v1600
      %1681 = vst [vmem:[#allocation3 + $0x68] sm:$0xff] %v1601
      %1682 = vst [vmem:[#allocation3 + $0x70] sm:$0xff] %v1602
      %1683 = vst [vmem:[#allocation3 + $0x78] sm:$0xff] %v1603
      %v1684 = vmul.f32 %v1620, %v1039
      %v1685 = vmul.f32 %v1621, %v1193
      %v1686 = vmul.f32 %v1622, %v1347
      %v1687 = vmul.f32 %v1623, %v1501
      %v1688 = vmul.f32 %v1624, %v1042
      %v1689 = vmul.f32 %v1625, %v1196
      %v1690 = vmul.f32 %v1626, %v1350
      %v1691 = vmul.f32 %v1627, %v1504
      %v1692 = vmul.f32 %v1628, %v1045
      %v1693 = vmul.f32 %v1629, %v1199
      %v1694 = vmul.f32 %v1630, %v1353
      %v1695 = vmul.f32 %v1631, %v1507
      %v1696 = vmul.f32 %v1632, %v1048
      %v1697 = vmul.f32 %v1633, %v1202
      %v1698 = vmul.f32 %v1634, %v1356
      %v1699 = vmul.f32 %v1635, %v1510
      %1700 = vst [vmem:[#allocation3 + $0x80] sm:$0xff] %v1684
      %1701 = vst [vmem:[#allocation3 + $0x88] sm:$0xff] %v1685
      %1702 = vst [vmem:[#allocation3 + $0x90] sm:$0xff] %v1686
      %1703 = vst [vmem:[#allocation3 + $0x98] sm:$0xff] %v1687
      %1704 = vst [vmem:[#allocation3 + $0xa0] sm:$0xff] %v1688
      %1705 = vst [vmem:[#allocation3 + $0xa8] sm:$0xff] %v1689
      %1706 = vst [vmem:[#allocation3 + $0xb0] sm:$0xff] %v1690
      %1707 = vst [vmem:[#allocation3 + $0xb8] sm:$0xff] %v1691
      %1708 = vst [vmem:[#allocation3 + $0xc0] sm:$0xff] %v1692
      %1709 = vst [vmem:[#allocation3 + $0xc8] sm:$0xff] %v1693
      %1710 = vst [vmem:[#allocation3 + $0xd0] sm:$0xff] %v1694
      %1711 = vst [vmem:[#allocation3 + $0xd8] sm:$0xff] %v1695
      %1712 = vst [vmem:[#allocation3 + $0xe0] sm:$0xff] %v1696
      %1713 = vst [vmem:[#allocation3 + $0xe8] sm:$0xff] %v1697
      %1714 = vst [vmem:[#allocation3 + $0xf0] sm:$0xff] %v1698
      %1715 = vst [vmem:[#allocation3 + $0xf8] sm:$0xff] %v1699
      %v1716 = vmul.f32 %v1620, %v1051
      %v1717 = vmul.f32 %v1621, %v1205
      %v1718 = vmul.f32 %v1622, %v1359
      %v1719 = vmul.f32 %v1623, %v1513
      %v1720 = vmul.f32 %v1624, %v1054
      %v1721 = vmul.f32 %v1625, %v1208
      %v1722 = vmul.f32 %v1626, %v1362
      %v1723 = vmul.f32 %v1627, %v1516
      %v1724 = vmul.f32 %v1628, %v1057
      %v1725 = vmul.f32 %v1629, %v1211
      %v1726 = vmul.f32 %v1630, %v1365
      %v1727 = vmul.f32 %v1631, %v1519
      %v1728 = vmul.f32 %v1632, %v1060
      %v1729 = vmul.f32 %v1633, %v1214
      %v1730 = vmul.f32 %v1634, %v1368
      %v1731 = vmul.f32 %v1635, %v1522
      %1732 = vst [vmem:[#allocation3 + $0x100] sm:$0xff] %v1716
      %1733 = vst [vmem:[#allocation3 + $0x108] sm:$0xff] %v1717
      %1734 = vst [vmem:[#allocation3 + $0x110] sm:$0xff] %v1718
      %1735 = vst [vmem:[#allocation3 + $0x118] sm:$0xff] %v1719
      %1736 = vst [vmem:[#allocation3 + $0x120] sm:$0xff] %v1720
      %1737 = vst [vmem:[#allocation3 + $0x128] sm:$0xff] %v1721
      %1738 = vst [vmem:[#allocation3 + $0x130] sm:$0xff] %v1722
      %1739 = vst [vmem:[#allocation3 + $0x138] sm:$0xff] %v1723
      %1740 = vst [vmem:[#allocation3 + $0x140] sm:$0xff] %v1724
      %1741 = vst [vmem:[#allocation3 + $0x148] sm:$0xff] %v1725
      %1742 = vst [vmem:[#allocation3 + $0x150] sm:$0xff] %v1726
      %1743 = vst [vmem:[#allocation3 + $0x158] sm:$0xff] %v1727
      %1744 = vst [vmem:[#allocation3 + $0x160] sm:$0xff] %v1728
      %1745 = vst [vmem:[#allocation3 + $0x168] sm:$0xff] %v1729
      %1746 = vst [vmem:[#allocation3 + $0x170] sm:$0xff] %v1730
      %1747 = vst [vmem:[#allocation3 + $0x178] sm:$0xff] %v1731
      %v1748 = vmul.f32 %v1620, %v1063
      %v1749 = vmul.f32 %v1621, %v1217
      %v1750 = vmul.f32 %v1622, %v1371
      %v1751 = vmul.f32 %v1623, %v1525
      %v1752 = vmul.f32 %v1624, %v1066
      %v1753 = vmul.f32 %v1625, %v1220
      %v1754 = vmul.f32 %v1626, %v1374
      %v1755 = vmul.f32 %v1627, %v1528
      %v1756 = vmul.f32 %v1628, %v1069
      %v1757 = vmul.f32 %v1629, %v1223
      %v1758 = vmul.f32 %v1630, %v1377
      %v1759 = vmul.f32 %v1631, %v1531
      %v1760 = vmul.f32 %v1632, %v1072
      %v1761 = vmul.f32 %v1633, %v1226
      %v1762 = vmul.f32 %v1634, %v1380
      %v1763 = vmul.f32 %v1635, %v1534
      %v1764 = vmul.f32 %v1652, %v1039
      %v1765 = vmul.f32 %v1653, %v1193
      %v1766 = vmul.f32 %v1654, %v1347
      %v1767 = vmul.f32 %v1655, %v1501
      %v1768 = vmul.f32 %v1656, %v1042
      %v1769 = vmul.f32 %v1657, %v1196
      %v1770 = vmul.f32 %v1658, %v1350
      %v1771 = vmul.f32 %v1659, %v1504
      %v1772 = vmul.f32 %v1660, %v1045
      %v1773 = vmul.f32 %v1661, %v1199
      %v1774 = vmul.f32 %v1662, %v1353
      %v1775 = vmul.f32 %v1663, %v1507
      %v1776 = vmul.f32 %v1664, %v1048
      %v1777 = vmul.f32 %v1665, %v1202
      %v1778 = vmul.f32 %v1666, %v1356
      %v1779 = vmul.f32 %v1667, %v1510
      %v1780 = vmul.f32 %v1764, %v1039
      %v1781 = vmul.f32 %v1765, %v1193
      %v1782 = vmul.f32 %v1766, %v1347
      %v1783 = vmul.f32 %v1767, %v1501
      %v1784 = vmul.f32 %v1768, %v1042
      %v1785 = vmul.f32 %v1769, %v1196
      %v1786 = vmul.f32 %v1770, %v1350
      %v1787 = vmul.f32 %v1771, %v1504
      %v1788 = vmul.f32 %v1772, %v1045
      %v1789 = vmul.f32 %v1773, %v1199
      %v1790 = vmul.f32 %v1774, %v1353
      %v1791 = vmul.f32 %v1775, %v1507
      %v1792 = vmul.f32 %v1776, %v1048
      %v1793 = vmul.f32 %v1777, %v1202
      %v1794 = vmul.f32 %v1778, %v1356
      %v1795 = vmul.f32 %v1779, %v1510
      %v1796 = vadd.f32 %v1748, %v1780
      %v1797 = vadd.f32 %v1749, %v1781
      %v1798 = vadd.f32 %v1750, %v1782
      %v1799 = vadd.f32 %v1751, %v1783
      %v1800 = vadd.f32 %v1752, %v1784
      %v1801 = vadd.f32 %v1753, %v1785
      %v1802 = vadd.f32 %v1754, %v1786
      %v1803 = vadd.f32 %v1755, %v1787
      %v1804 = vadd.f32 %v1756, %v1788
      %v1805 = vadd.f32 %v1757, %v1789
      %v1806 = vadd.f32 %v1758, %v1790
      %v1807 = vadd.f32 %v1759, %v1791
      %v1808 = vadd.f32 %v1760, %v1792
      %v1809 = vadd.f32 %v1761, %v1793
      %v1810 = vadd.f32 %v1762, %v1794
      %v1811 = vadd.f32 %v1763, %v1795
      %1812 = vst [vmem:[#allocation3 + $0x180] sm:$0xff] %v1796
      %1813 = vst [vmem:[#allocation3 + $0x188] sm:$0xff] %v1797
      %1814 = vst [vmem:[#allocation3 + $0x190] sm:$0xff] %v1798
      %1815 = vst [vmem:[#allocation3 + $0x198] sm:$0xff] %v1799
      %1816 = vst [vmem:[#allocation3 + $0x1a0] sm:$0xff] %v1800
      %1817 = vst [vmem:[#allocation3 + $0x1a8] sm:$0xff] %v1801
      %1818 = vst [vmem:[#allocation3 + $0x1b0] sm:$0xff] %v1802
      %1819 = vst [vmem:[#allocation3 + $0x1b8] sm:$0xff] %v1803
      %1820 = vst [vmem:[#allocation3 + $0x1c0] sm:$0xff] %v1804
      %1821 = vst [vmem:[#allocation3 + $0x1c8] sm:$0xff] %v1805
      %1822 = vst [vmem:[#allocation3 + $0x1d0] sm:$0xff] %v1806
      %1823 = vst [vmem:[#allocation3 + $0x1d8] sm:$0xff] %v1807
      %1824 = vst [vmem:[#allocation3 + $0x1e0] sm:$0xff] %v1808
      %1825 = vst [vmem:[#allocation3 + $0x1e8] sm:$0xff] %v1809
      %1826 = vst [vmem:[#allocation3 + $0x1f0] sm:$0xff] %v1810
      %1827 = vst [vmem:[#allocation3 + $0x1f8] sm:$0xff] %v1811
      %v1828 = vmul.f32 %v1620, %v1075
      %v1829 = vmul.f32 %v1621, %v1229
      %v1830 = vmul.f32 %v1622, %v1383
      %v1831 = vmul.f32 %v1623, %v1537
      %v1832 = vmul.f32 %v1624, %v1078
      %v1833 = vmul.f32 %v1625, %v1232
      %v1834 = vmul.f32 %v1626, %v1386
      %v1835 = vmul.f32 %v1627, %v1540
      %v1836 = vmul.f32 %v1628, %v1081
      %v1837 = vmul.f32 %v1629, %v1235
      %v1838 = vmul.f32 %v1630, %v1389
      %v1839 = vmul.f32 %v1631, %v1543
      %v1840 = vmul.f32 %v1632, %v1084
      %v1841 = vmul.f32 %v1633, %v1238
      %v1842 = vmul.f32 %v1634, %v1392
      %v1843 = vmul.f32 %v1635, %v1546
      %v1844 = vmul.f32 %v1652, %v1051
      %v1845 = vmul.f32 %v1653, %v1205
      %v1846 = vmul.f32 %v1654, %v1359
      %v1847 = vmul.f32 %v1655, %v1513
      %v1848 = vmul.f32 %v1656, %v1054
      %v1849 = vmul.f32 %v1657, %v1208
      %v1850 = vmul.f32 %v1658, %v1362
      %v1851 = vmul.f32 %v1659, %v1516
      %v1852 = vmul.f32 %v1660, %v1057
      %v1853 = vmul.f32 %v1661, %v1211
      %v1854 = vmul.f32 %v1662, %v1365
      %v1855 = vmul.f32 %v1663, %v1519
      %v1856 = vmul.f32 %v1664, %v1060
      %v1857 = vmul.f32 %v1665, %v1214
      %v1858 = vmul.f32 %v1666, %v1368
      %v1859 = vmul.f32 %v1667, %v1522
      %v1860 = vmul.f32 %v1844, %v1051
      %v1861 = vmul.f32 %v1845, %v1205
      %v1862 = vmul.f32 %v1846, %v1359
      %v1863 = vmul.f32 %v1847, %v1513
      %v1864 = vmul.f32 %v1848, %v1054
      %v1865 = vmul.f32 %v1849, %v1208
      %v1866 = vmul.f32 %v1850, %v1362
      %v1867 = vmul.f32 %v1851, %v1516
      %v1868 = vmul.f32 %v1852, %v1057
      %v1869 = vmul.f32 %v1853, %v1211
      %v1870 = vmul.f32 %v1854, %v1365
      %v1871 = vmul.f32 %v1855, %v1519
      %v1872 = vmul.f32 %v1856, %v1060
      %v1873 = vmul.f32 %v1857, %v1214
      %v1874 = vmul.f32 %v1858, %v1368
      %v1875 = vmul.f32 %v1859, %v1522
      %v1876 = vadd.f32 %v1828, %v1860
      %v1877 = vadd.f32 %v1829, %v1861
      %v1878 = vadd.f32 %v1830, %v1862
      %v1879 = vadd.f32 %v1831, %v1863
      %v1880 = vadd.f32 %v1832, %v1864
      %v1881 = vadd.f32 %v1833, %v1865
      %v1882 = vadd.f32 %v1834, %v1866
      %v1883 = vadd.f32 %v1835, %v1867
      %v1884 = vadd.f32 %v1836, %v1868
      %v1885 = vadd.f32 %v1837, %v1869
      %v1886 = vadd.f32 %v1838, %v1870
      %v1887 = vadd.f32 %v1839, %v1871
      %v1888 = vadd.f32 %v1840, %v1872
      %v1889 = vadd.f32 %v1841, %v1873
      %v1890 = vadd.f32 %v1842, %v1874
      %v1891 = vadd.f32 %v1843, %v1875
      %1892 = vst [vmem:[#allocation3 + $0x200] sm:$0xff] %v1876
      %1893 = vst [vmem:[#allocation3 + $0x208] sm:$0xff] %v1877
      %1894 = vst [vmem:[#allocation3 + $0x210] sm:$0xff] %v1878
      %1895 = vst [vmem:[#allocation3 + $0x218] sm:$0xff] %v1879
      %1896 = vst [vmem:[#allocation3 + $0x220] sm:$0xff] %v1880
      %1897 = vst [vmem:[#allocation3 + $0x228] sm:$0xff] %v1881
      %1898 = vst [vmem:[#allocation3 + $0x230] sm:$0xff] %v1882
      %1899 = vst [vmem:[#allocation3 + $0x238] sm:$0xff] %v1883
      %1900 = vst [vmem:[#allocation3 + $0x240] sm:$0xff] %v1884
      %1901 = vst [vmem:[#allocation3 + $0x248] sm:$0xff] %v1885
      %1902 = vst [vmem:[#allocation3 + $0x250] sm:$0xff] %v1886
      %1903 = vst [vmem:[#allocation3 + $0x258] sm:$0xff] %v1887
      %1904 = vst [vmem:[#allocation3 + $0x260] sm:$0xff] %v1888
      %1905 = vst [vmem:[#allocation3 + $0x268] sm:$0xff] %v1889
      %1906 = vst [vmem:[#allocation3 + $0x270] sm:$0xff] %v1890
      %1907 = vst [vmem:[#allocation3 + $0x278] sm:$0xff] %v1891
      %v1908 = vld [vmem:[%s5] sm:$0xff]
      %v1909 = vld [vmem:[%s5 + $0x8] sm:$0xff]
      %v1910 = vld [vmem:[#allocation3] sm:$0xff]
      %v1911 = vld [vmem:[#allocation3 + $0x8] sm:$0xff]
      %v1912 = vld [vmem:[#allocation3 + $0x10] sm:$0xff]
      %v1913 = vld [vmem:[#allocation3 + $0x18] sm:$0xff]
      %v1914 = vld [vmem:[#allocation3 + $0x20] sm:$0xff]
      %v1915 = vld [vmem:[#allocation3 + $0x28] sm:$0xff]
      %v1916 = vld [vmem:[#allocation3 + $0x30] sm:$0xff]
      %v1917 = vld [vmem:[#allocation3 + $0x38] sm:$0xff]
      %v1918 = vld [vmem:[#allocation3 + $0x40] sm:$0xff]
      %v1919 = vld [vmem:[#allocation3 + $0x48] sm:$0xff]
      %v1920 = vld [vmem:[#allocation3 + $0x50] sm:$0xff]
      %v1921 = vld [vmem:[#allocation3 + $0x58] sm:$0xff]
      %v1922 = vld [vmem:[#allocation3 + $0x60] sm:$0xff]
      %v1923 = vld [vmem:[#allocation3 + $0x68] sm:$0xff]
      %v1924 = vld [vmem:[#allocation3 + $0x70] sm:$0xff]
      %v1925 = vld [vmem:[#allocation3 + $0x78] sm:$0xff]
      %v1926 = vld [vmem:[#allocation3 + $0x80] sm:$0xff]
      %v1927 = vld [vmem:[#allocation3 + $0x88] sm:$0xff]
      %v1928 = vld [vmem:[#allocation3 + $0x90] sm:$0xff]
      %v1929 = vld [vmem:[#allocation3 + $0x98] sm:$0xff]
      %v1930 = vld [vmem:[#allocation3 + $0xa0] sm:$0xff]
      %v1931 = vld [vmem:[#allocation3 + $0xa8] sm:$0xff]
      %v1932 = vld [vmem:[#allocation3 + $0xb0] sm:$0xff]
      %v1933 = vld [vmem:[#allocation3 + $0xb8] sm:$0xff]
      %v1934 = vld [vmem:[#allocation3 + $0xc0] sm:$0xff]
      %v1935 = vld [vmem:[#allocation3 + $0xc8] sm:$0xff]
      %v1936 = vld [vmem:[#allocation3 + $0xd0] sm:$0xff]
      %v1937 = vld [vmem:[#allocation3 + $0xd8] sm:$0xff]
      %v1938 = vld [vmem:[#allocation3 + $0xe0] sm:$0xff]
      %v1939 = vld [vmem:[#allocation3 + $0xe8] sm:$0xff]
      %v1940 = vld [vmem:[#allocation3 + $0xf0] sm:$0xff]
      %v1941 = vld [vmem:[#allocation3 + $0xf8] sm:$0xff]
      %v1942 = vld [vmem:[#allocation3 + $0x100] sm:$0xff]
      %v1943 = vld [vmem:[#allocation3 + $0x108] sm:$0xff]
      %v1944 = vld [vmem:[#allocation3 + $0x110] sm:$0xff]
      %v1945 = vld [vmem:[#allocation3 + $0x118] sm:$0xff]
      %v1946 = vld [vmem:[#allocation3 + $0x120] sm:$0xff]
      %v1947 = vld [vmem:[#allocation3 + $0x128] sm:$0xff]
      %v1948 = vld [vmem:[#allocation3 + $0x130] sm:$0xff]
      %v1949 = vld [vmem:[#allocation3 + $0x138] sm:$0xff]
      %v1950 = vld [vmem:[#allocation3 + $0x140] sm:$0xff]
      %v1951 = vld [vmem:[#allocation3 + $0x148] sm:$0xff]
      %v1952 = vld [vmem:[#allocation3 + $0x150] sm:$0xff]
      %v1953 = vld [vmem:[#allocation3 + $0x158] sm:$0xff]
      %v1954 = vld [vmem:[#allocation3 + $0x160] sm:$0xff]
      %v1955 = vld [vmem:[#allocation3 + $0x168] sm:$0xff]
      %v1956 = vld [vmem:[#allocation3 + $0x170] sm:$0xff]
      %v1957 = vld [vmem:[#allocation3 + $0x178] sm:$0xff]
      %v1958 = vld [vmem:[#allocation3 + $0x180] sm:$0xff]
      %v1959 = vld [vmem:[#allocation3 + $0x188] sm:$0xff]
      %v1960 = vld [vmem:[#allocation3 + $0x190] sm:$0xff]
      %v1961 = vld [vmem:[#allocation3 + $0x198] sm:$0xff]
      %v1962 = vld [vmem:[#allocation3 + $0x1a0] sm:$0xff]
      %v1963 = vld [vmem:[#allocation3 + $0x1a8] sm:$0xff]
      %v1964 = vld [vmem:[#allocation3 + $0x1b0] sm:$0xff]
      %v1965 = vld [vmem:[#allocation3 + $0x1b8] sm:$0xff]
      %v1966 = vld [vmem:[#allocation3 + $0x1c0] sm:$0xff]
      %v1967 = vld [vmem:[#allocation3 + $0x1c8] sm:$0xff]
      %v1968 = vld [vmem:[#allocation3 + $0x1d0] sm:$0xff]
      %v1969 = vld [vmem:[#allocation3 + $0x1d8] sm:$0xff]
      %v1970 = vld [vmem:[#allocation3 + $0x1e0] sm:$0xff]
      %v1971 = vld [vmem:[#allocation3 + $0x1e8] sm:$0xff]
      %v1972 = vld [vmem:[#allocation3 + $0x1f0] sm:$0xff]
      %v1973 = vld [vmem:[#allocation3 + $0x1f8] sm:$0xff]
      %v1974 = vld [vmem:[#allocation3 + $0x200] sm:$0xff]
      %v1975 = vld [vmem:[#allocation3 + $0x208] sm:$0xff]
      %v1976 = vld [vmem:[#allocation3 + $0x210] sm:$0xff]
      %v1977 = vld [vmem:[#allocation3 + $0x218] sm:$0xff]
      %v1978 = vld [vmem:[#allocation3 + $0x220] sm:$0xff]
      %v1979 = vld [vmem:[#allocation3 + $0x228] sm:$0xff]
      %v1980 = vld [vmem:[#allocation3 + $0x230] sm:$0xff]
      %v1981 = vld [vmem:[#allocation3 + $0x238] sm:$0xff]
      %v1982 = vld [vmem:[#allocation3 + $0x240] sm:$0xff]
      %v1983 = vld [vmem:[#allocation3 + $0x248] sm:$0xff]
      %v1984 = vld [vmem:[#allocation3 + $0x250] sm:$0xff]
      %v1985 = vld [vmem:[#allocation3 + $0x258] sm:$0xff]
      %v1986 = vld [vmem:[#allocation3 + $0x260] sm:$0xff]
      %v1987 = vld [vmem:[#allocation3 + $0x268] sm:$0xff]
      %v1988 = vld [vmem:[#allocation3 + $0x270] sm:$0xff]
      %v1989 = vld [vmem:[#allocation3 + $0x278] sm:$0xff]
      %v1990 = vld [vmem:[%s6] sm:$0xff]
      %1992 = vset.pattern.permute.xlu0 0
      %1993 = vperm.xlu0 %1992, %v1990
      %v1994 = vpop.permute.xlu0 %1993
      %v1997 = vsel %vm871, %v1909, 0
      %1999 = vmatpush.msra.mxu0 %v1970
      %2000 = vmatpush.msra.mxu0 %v1966
      %2001 = vmatpush.msra.mxu0 %v1962
      %2002 = vmatpush.msra.mxu0 %v1958
      %2003 = vmatpush.msra.mxu0 %v1954
      %2004 = vmatpush.msra.mxu0 %v1950
      %2005 = vmatpush.msra.mxu0 %v1946
      %2006 = vmatpush.msra.mxu0 %v1942
      %2007 = vmatpush.msra.mxu0 %v1938
      %2008 = vmatpush.msra.mxu0 %v1934
      %2009 = vmatpush.msra.mxu0 %v1930
      %2010 = vmatpush.msra.mxu0 %v1926
      %2011 = vmatpush.msra.mxu0 %v1922
      %2012 = vmatpush.msra.mxu0 %v1918
      %2013 = vmatpush.msra.mxu0 %v1914
      %2014 = vmatpush.msra.mxu0 %v1910
      %2015 = vmatmul.f32.gmra.mxu0 %v1908
      %v2016 = vpop.f32.mrf.mxu0
      %v2017 = vadd.f32 %v1994, %v2016
      %2018 = vdwg.mxu0
      %2019 = vmatpush.msra.mxu0 0.0
      %2020 = vmatpush.msra.mxu0 0.0
      %2021 = vmatpush.msra.mxu0 0.0
      %2022 = vmatpush.msra.mxu0 0.0
      %2023 = vmatpush.msra.mxu0 0.0
      %2024 = vmatpush.msra.mxu0 0.0
      %2025 = vmatpush.msra.mxu0 0.0
      %2026 = vmatpush.msra.mxu0 0.0
      %2027 = vmatpush.msra.mxu0 0.0
      %2028 = vmatpush.msra.mxu0 0.0
      %2029 = vmatpush.msra.mxu0 0.0
      %2030 = vmatpush.msra.mxu0 0.0
      %2031 = vmatpush.msra.mxu0 %v1986
      %2032 = vmatpush.msra.mxu0 %v1982
      %2033 = vmatpush.msra.mxu0 %v1978
      %2034 = vmatpush.msra.mxu0 %v1974
      %2035 = vmatmul.f32.gmra.mxu0 %v1997
      %v2036 = vpop.f32.mrf.mxu0
      %v2037 = vadd.f32 %v2017, %v2036
      %2038 = vdwg.mxu0
      %2039 = vmatpush.msra.mxu0 %v1971
      %2040 = vmatpush.msra.mxu0 %v1967
      %2041 = vmatpush.msra.mxu0 %v1963
      %2042 = vmatpush.msra.mxu0 %v1959
      %2043 = vmatpush.msra.mxu0 %v1955
      %2044 = vmatpush.msra.mxu0 %v1951
      %2045 = vmatpush.msra.mxu0 %v1947
      %2046 = vmatpush.msra.mxu0 %v1943
      %2047 = vmatpush.msra.mxu0 %v1939
      %2048 = vmatpush.msra.mxu0 %v1935
      %2049 = vmatpush.msra.mxu0 %v1931
      %2050 = vmatpush.msra.mxu0 %v1927
      %2051 = vmatpush.msra.mxu0 %v1923
      %2052 = vmatpush.msra.mxu0 %v1919
      %2053 = vmatpush.msra.mxu0 %v1915
      %2054 = vmatpush.msra.mxu0 %v1911
      %2055 = vmatmul.f32.gmra.mxu0 %v1908
      %v2056 = vpop.f32.mrf.mxu0
      %v2057 = vadd.f32 %v1994, %v2056
      %2058 = vdwg.mxu0
      %2059 = vmatpush.msra.mxu0 0.0
      %2060 = vmatpush.msra.mxu0 0.0
      %2061 = vmatpush.msra.mxu0 0.0
      %2062 = vmatpush.msra.mxu0 0.0
      %2063 = vmatpush.msra.mxu0 0.0
      %2064 = vmatpush.msra.mxu0 0.0
      %2065 = vmatpush.msra.mxu0 0.0
      %2066 = vmatpush.msra.mxu0 0.0
      %2067 = vmatpush.msra.mxu0 0.0
      %2068 = vmatpush.msra.mxu0 0.0
      %2069 = vmatpush.msra.mxu0 0.0
      %2070 = vmatpush.msra.mxu0 0.0
      %2071 = vmatpush.msra.mxu0 %v1987
      %2072 = vmatpush.msra.mxu0 %v1983
      %2073 = vmatpush.msra.mxu0 %v1979
      %2074 = vmatpush.msra.mxu0 %v1975
      %2075 = vmatmul.f32.gmra.mxu0 %v1997
      %v2076 = vpop.f32.mrf.mxu0
      %v2077 = vadd.f32 %v2057, %v2076
      %2078 = vdwg.mxu0
      %2079 = vmatpush.msra.mxu0 %v1972
      %2080 = vmatpush.msra.mxu0 %v1968
      %2081 = vmatpush.msra.mxu0 %v1964
      %2082 = vmatpush.msra.mxu0 %v1960
      %2083 = vmatpush.msra.mxu0 %v1956
      %2084 = vmatpush.msra.mxu0 %v1952
      %2085 = vmatpush.msra.mxu0 %v1948
      %2086 = vmatpush.msra.mxu0 %v1944
      %2087 = vmatpush.msra.mxu0 %v1940
      %2088 = vmatpush.msra.mxu0 %v1936
      %2089 = vmatpush.msra.mxu0 %v1932
      %2090 = vmatpush.msra.mxu0 %v1928
      %2091 = vmatpush.msra.mxu0 %v1924
      %2092 = vmatpush.msra.mxu0 %v1920
      %2093 = vmatpush.msra.mxu0 %v1916
      %2094 = vmatpush.msra.mxu0 %v1912
      %2095 = vmatmul.f32.gmra.mxu0 %v1908
      %v2096 = vpop.f32.mrf.mxu0
      %v2097 = vadd.f32 %v1994, %v2096
      %2098 = vdwg.mxu0
      %2099 = vmatpush.msra.mxu0 0.0
      %2100 = vmatpush.msra.mxu0 0.0
      %2101 = vmatpush.msra.mxu0 0.0
      %2102 = vmatpush.msra.mxu0 0.0
      %2103 = vmatpush.msra.mxu0 0.0
      %2104 = vmatpush.msra.mxu0 0.0
      %2105 = vmatpush.msra.mxu0 0.0
      %2106 = vmatpush.msra.mxu0 0.0
      %2107 = vmatpush.msra.mxu0 0.0
      %2108 = vmatpush.msra.mxu0 0.0
      %2109 = vmatpush.msra.mxu0 0.0
      %2110 = vmatpush.msra.mxu0 0.0
      %2111 = vmatpush.msra.mxu0 %v1988
      %2112 = vmatpush.msra.mxu0 %v1984
      %2113 = vmatpush.msra.mxu0 %v1980
      %2114 = vmatpush.msra.mxu0 %v1976
      %2115 = vmatmul.f32.gmra.mxu0 %v1997
      %v2116 = vpop.f32.mrf.mxu0
      %v2117 = vadd.f32 %v2097, %v2116
      %2118 = vdwg.mxu0
      %2119 = vmatpush.msra.mxu0 %v1973
      %2120 = vmatpush.msra.mxu0 %v1969
      %2121 = vmatpush.msra.mxu0 %v1965
      %2122 = vmatpush.msra.mxu0 %v1961
      %2123 = vmatpush.msra.mxu0 %v1957
      %2124 = vmatpush.msra.mxu0 %v1953
      %2125 = vmatpush.msra.mxu0 %v1949
      %2126 = vmatpush.msra.mxu0 %v1945
      %2127 = vmatpush.msra.mxu0 %v1941
      %2128 = vmatpush.msra.mxu0 %v1937
      %2129 = vmatpush.msra.mxu0 %v1933
      %2130 = vmatpush.msra.mxu0 %v1929
      %2131 = vmatpush.msra.mxu0 %v1925
      %2132 = vmatpush.msra.mxu0 %v1921
      %2133 = vmatpush.msra.mxu0 %v1917
      %2134 = vmatpush.msra.mxu0 %v1913
      %2135 = vmatmul.f32.gmra.mxu0 %v1908
      %v2136 = vpop.f32.mrf.mxu0
      %v2137 = vadd.f32 %v1994, %v2136
      %2138 = vdwg.mxu0
      %2139 = vmatpush.msra.mxu0 0.0
      %2140 = vmatpush.msra.mxu0 0.0
      %2141 = vmatpush.msra.mxu0 0.0
      %2142 = vmatpush.msra.mxu0 0.0
      %2143 = vmatpush.msra.mxu0 0.0
      %2144 = vmatpush.msra.mxu0 0.0
      %2145 = vmatpush.msra.mxu0 0.0
      %2146 = vmatpush.msra.mxu0 0.0
      %2147 = vmatpush.msra.mxu0 0.0
      %2148 = vmatpush.msra.mxu0 0.0
      %2149 = vmatpush.msra.mxu0 0.0
      %2150 = vmatpush.msra.mxu0 0.0
      %2151 = vmatpush.msra.mxu0 %v1989
      %2152 = vmatpush.msra.mxu0 %v1985
      %2153 = vmatpush.msra.mxu0 %v1981
      %2154 = vmatpush.msra.mxu0 %v1977
      %2155 = vmatmul.f32.gmra.mxu0 %v1997
      %v2156 = vpop.f32.mrf.mxu0
      %v2157 = vadd.f32 %v2137, %v2156
      %2158 = vdwg.mxu0
      %2159 = vst [vmem:[%s280] sm:$0xff] %v2037
      %2160 = vst [vmem:[%s280 + $0x8] sm:$0xff] %v2077
      %2161 = vst [vmem:[%s280 + $0x10] sm:$0xff] %v2117
      %2162 = vst [vmem:[%s280 + $0x18] sm:$0xff] %v2157
      %s2163 = smul.u32 4, %s18
      %p2164 = scmp.lt.s32.totalorder %s2163, 7
      %s2165 = scalar_select %p2164, %s2163, 7
      %s2166 = smul.addr %s2165, 8
      %s2167 = scalar_lea.vmem %s7, %s2166
      // Predicated region
      $region49: #{gradient_layer.1} parent=47 // pred_check
        %p2168 = pneg %p188
      $region50: #{gradient_layer.1} parent=47 // pred_check_branch
        %2170 = sbr.rel (%p2168) target = $region52
      $region51: #{gradient_layer.1} parent=47 // pred_region
        %s2171 = smul.u32 4, %s18
      $region52: #{gradient_layer.1} parent=47 // pred_fallthru
        _
    $region48: #{gradient_layer.1} parent=5 // pred_fallthru
      _
    %p2172 = scmp.le.s32.totalorder 2, %s13
    // Predicated region
    $region53: #{gradient_layer.1} parent=5 // pred_check
      %p2173 = pneg %p2172
    $region54: #{gradient_layer.1} parent=5 // pred_check_branch
      %2175 = sbr.rel (%p2173) target = $region56
    $region55: #{gradient_layer.1} parent=5 // pred_region
      %s2176 = ssub.s32 %s13, 2
      // Predicated region
      $region57: #{gradient_layer.1} parent=55 // pred_check
        %p2177 = pneg %p194
      $region58: #{gradient_layer.1} parent=55 // pred_check_branch
        %2179 = sbr.rel (%p2177) target = $region60
      $region59: #{gradient_layer.1} parent=55 // pred_region
        %s2180 = smul.u32 4, %s19
        %p2181 = scmp.lt.s32.totalorder %s2180, 7
        %s2182 = scalar_select %p2181, %s2180, 7
        %s2183 = smul.addr %s2182, 8
        %s2184 = scalar_lea.vmem %s7, %s2183
      $region60: #{gradient_layer.1} parent=55 // pred_fallthru
        _
    $region56: #{gradient_layer.1} parent=5 // pred_fallthru
      _
  $region6: #{gradient_layer.1} parent=0 // loop_footer
    %s17 = sadd.s32 1, %s13
  $region7: #{gradient_layer.1} parent=0 // loop_footer_branch
    %12 = sbr.rel target = $region3
  $region8: #{gradient_layer.1} parent=0 // loop_exit
    _

</llo_original>
